<compile_context>
chip_gen: v7x
topology: tpu7x:2x2x1
jax: 0.10.0
libtpu: 0.0.40
codegen_flags: <defaults>
</compile_context>

<pallas_src>
import numpy as np
import jax
import jax.numpy as jnp
from jax import lax
from jax.experimental import pallas as pl
from jax.experimental.pallas import tpu as pltpu

NEG_INF = -1.0e30   # finite "minus infinity" keeps all in-kernel logsumexps NaN-free
S_PAD = 128         # extended-label axis padded to one lane row


def _round_up(a, m):
    return (a + m - 1) // m * m


# ----------------------------------------------------------------------------
# Kernel 1: projection + online (V-chunked) log-softmax normalizer +
#           extended-label gather, output stored directly in DP layout.
# grid = (n_blocks, T_tiles, V_tiles);   V axis is the online-LSE reduction.
# ----------------------------------------------------------------------------
def _proj_lse_gather_kernel(x_ref, wt_ref, b_ref, wext_ref, bext_ref, o_ref,
                            m_ref, l_ref, ext_ref):
    v = pl.program_id(2)
    nb_k, tt, d = x_ref.shape          # (NB, tile_t, D)
    r = nb_k * tt

    @pl.when(v == 0)
    def _init():
        m_ref[...] = jnp.full(m_ref.shape, NEG_INF, jnp.float32)
        l_ref[...] = jnp.zeros(l_ref.shape, jnp.float32)
        # extended-label logits (independent of the V sweep): batched matmul
        # against the per-sample gathered weight rows W[ext]  (NB, 128, D).
        ext_ref[...] = (
            jnp.einsum("ntd,nsd->nts", x_ref[...], wext_ref[...],
                       preferred_element_type=jnp.float32)
            + bext_ref[...][:, None, :])

    # one vocab chunk of the full-vocab logits, used only for the normalizer
    x2 = x_ref[...].reshape(r, d)                                  # (R, D)
    logits_c = (jnp.dot(x2, wt_ref[...], preferred_element_type=jnp.float32)
                + b_ref[...])                                      # (R, CV)
    m_c = jnp.max(logits_c, axis=-1, keepdims=True)
    m_new = jnp.maximum(m_ref[...], m_c)
    l_ref[...] = (l_ref[...] * jnp.exp(m_ref[...] - m_new)
                  + jnp.sum(jnp.exp(logits_c - m_new), axis=-1, keepdims=True))
    m_ref[...] = m_new

    @pl.when(v == pl.num_programs(2) - 1)
    def _finalize():
        lse = m_ref[...] + jnp.log(l_ref[...])                     # (R, 1)
        lp3 = ext_ref[...] - lse.reshape(nb_k, tt, 1)              # (NB, tt, 128)
        # interleave to DP layout: one lane-dense (NB, 128) row store per step
        for t in range(tt):
            o_ref[t] = lp3[:, t, :]


def project_logsoftmax_gather(hs_p, Wt, b2, W_ext, b_ext,
                              n_blocks, NB, T_pad, tile_t, V_pad, CV):
    D = hs_p.shape[-1]
    T_tiles = T_pad // tile_t
    V_tiles = V_pad // CV
    return pl.pallas_call(
        _proj_lse_gather_kernel,
        out_shape=jax.ShapeDtypeStruct((n_blocks * T_pad, NB, S_PAD), jnp.float32),
        grid_spec=pltpu.PrefetchScalarGridSpec(
            num_scalar_prefetch=0,
            grid=(n_blocks, T_tiles, V_tiles),
            in_specs=[
                pl.BlockSpec((NB, tile_t, D), lambda nb, t, v: (nb, t, 0)),
                pl.BlockSpec((D, CV), lambda nb, t, v: (0, v)),
                pl.BlockSpec((1, CV), lambda nb, t, v: (0, v)),
                pl.BlockSpec((NB, S_PAD, D), lambda nb, t, v: (nb, 0, 0)),
                pl.BlockSpec((NB, S_PAD), lambda nb, t, v: (nb, 0)),
            ],
            out_specs=pl.BlockSpec((tile_t, NB, S_PAD),
                                   lambda nb, t, v: (nb * T_tiles + t, 0, 0)),
            scratch_shapes=[
                pltpu.VMEM((NB * tile_t, 1), jnp.float32),   # running max
                pltpu.VMEM((NB * tile_t, 1), jnp.float32),   # running sum
                pltpu.VMEM((NB, tile_t, S_PAD), jnp.float32),  # ext logits
            ]),
        compiler_params=pltpu.CompilerParams(
            dimension_semantics=("parallel", "parallel", "arbitrary"),
            vmem_limit_bytes=64 * 1024 * 1024),
    )(hs_p, Wt, b2, W_ext, b_ext)


# ----------------------------------------------------------------------------
# Kernel 2: CTC alpha dynamic program, NB samples per block, T-chunked.
# grid = (n_blocks, n_tchunks);  alpha is carried in VMEM scratch across chunks.
# ----------------------------------------------------------------------------
def _ctc_alpha_kernel(tmax_ref, lp_ref, skip_ref, end_ref, hlen_ref, o_ref,
                      alpha_ref):
    nb = pl.program_id(0)
    c = pl.program_id(1)
    n_tc = pl.num_programs(1)
    t_chunk = lp_ref.shape[0]
    nb_k, s = alpha_ref.shape

    lane = lax.broadcasted_iota(jnp.int32, (nb_k, s), 1)
    skip = skip_ref[...]                       # (NB, 128) additive (0 / NEG_INF)
    hlen_v = hlen_ref[...]                     # (NB, 1) int32
    t_max = tmax_ref[nb]                       # longest hlen in this block
    t0 = c * t_chunk

    @pl.when(c == 0)
    def _init():
        alpha_ref[...] = jnp.where(lane < 2, lp_ref[0], NEG_INF)

    lo = (c == 0).astype(jnp.int32)            # chunk 0 starts the DP at t = 1
    hi = jnp.clip(t_max - t0, 0, t_chunk)      # early stop at the block max hlen

    def body(t, alpha):
        lp_t = lp_ref[t]                       # (NB, 128) dense vreg load
        a0 = alpha
        a1 = jnp.where(lane >= 1, pltpu.roll(alpha, 1, axis=1), NEG_INF)
        a2 = jnp.where(lane >= 2, pltpu.roll(alpha, 2, axis=1), NEG_INF) + skip
        m = jnp.maximum(jnp.maximum(a0, a1), a2)
        lse3 = m + jnp.log(jnp.exp(a0 - m) + jnp.exp(a1 - m) + jnp.exp(a2 - m))
        new = jnp.maximum(lse3 + lp_t, NEG_INF)
        # freeze each row past its own input length
        return jnp.where(t0 + t < hlen_v, new, alpha)

    alpha_ref[...] = lax.fori_loop(lo, hi, body, alpha_ref[...])

    @pl.when(c == n_tc - 1)
    def _finalize():
        a_end = alpha_ref[...] + end_ref[...]
        m = jnp.max(a_end, axis=-1, keepdims=True)
        lse = m + jnp.log(jnp.sum(jnp.exp(a_end - m), axis=-1, keepdims=True))
        o_ref[...] = jnp.where(lse > 0.5 * NEG_INF, -lse, 0.0)   # zero_infinity


# ----------------------------------------------------------------------------
# Wrapper: full CTC forward (sum CTC loss / batch size)
# ----------------------------------------------------------------------------
def ctc_loss(hs, hlens, ys, ylens, W, b, use_bf16=False):
    N, T, D = hs.shape
    V = W.shape[0]
    U = ys.shape[1]
    S = 2 * U + 1
    assert S <= S_PAD, "extended label sequence must fit in 128 lanes"

    f32 = jnp.float32
    in_dt = jnp.bfloat16 if use_bf16 else f32

    # ---- tiling parameters --------------------------------------------------
    NB = 32 if N >= 32 else 8                  # samples per DP / projection block
    N_pad = _round_up(N, NB)
    n_blocks = N_pad // NB

    tile_t = min(256 // NB, _round_up(T, 8))   # NB*tile_t rows per MXU step
    if use_bf16:
        tile_t = _round_up(tile_t, 32)         # keep packed-sublane reshapes exact
    T_pad = _round_up(T, tile_t)
    T_chunk = min(256, T_pad)                  # DP lp chunk (bounds VMEM on v7x)
    T_pad = _round_up(T_pad, T_chunk)
    n_tc = T_pad // T_chunk

    V_pad = _round_up(V, 128)                  # lane-dense vocab
    if V_pad > 512:
        V_pad = _round_up(V_pad, 512)
    CV = min(V_pad, 512)                       # vocab chunk for the online LSE

    # ---- padded operands ----------------------------------------------------
    hs_p = jnp.pad(hs.astype(f32),
                   ((0, N_pad - N), (0, T_pad - T), (0, 0))).astype(in_dt)
    hlens_p = jnp.pad(hlens.astype(jnp.int32), (0, N_pad - N))
    ys_p = jnp.pad(ys.astype(jnp.int32), ((0, N_pad - N), (0, 0)))
    ylens_p = jnp.pad(ylens.astype(jnp.int32), (0, N_pad - N))

    W_f = W.astype(f32)
    Wt = jnp.pad(W_f.T, ((0, 0), (0, V_pad - V))).astype(in_dt)          # (D, V_pad)
    b2 = jnp.pad(b.astype(f32), (0, V_pad - V),
                 constant_values=NEG_INF).reshape(1, V_pad)              # pad -> -inf

    # ---- extended labels (blank, y1, blank, ..., blank), masks --------------
    s_idx = jnp.arange(S_PAD)
    if U > 0:
        lab_idx = jnp.clip((s_idx - 1) // 2, 0, U - 1)
        ys_g = ys_p[:, lab_idx]
        ext = jnp.where(((s_idx % 2) == 1) & (s_idx < S), ys_g, 0)
    else:
        ext = jnp.zeros((N_pad, S_PAD), jnp.int32)

    W_ext = W_f[ext].astype(in_dt)             # (N_pad, 128, D) — no XLA transpose
    b_ext = b.astype(f32)[ext]                 # (N_pad, 128)

    valid = s_idx[None, :] < (2 * ylens_p[:, None] + 1)
    ext_m2 = jnp.pad(ext, ((0, 0), (2, 0)))[:, :S_PAD]
    skip_ok = (s_idx[None, :] >= 2) & (ext != 0) & (ext != ext_m2) & valid
    skip_add = jnp.where(skip_ok, 0.0, NEG_INF).astype(f32)

    end_ok = (s_idx[None, :] == 2 * ylens_p[:, None]) | \
             (s_idx[None, :] == 2 * ylens_p[:, None] - 1)
    end_add = jnp.where(end_ok & valid, 0.0, NEG_INF).astype(f32)

    hlen_vec = hlens_p.reshape(N_pad, 1)
    block_tmax = jnp.max(hlens_p.reshape(n_blocks, NB), axis=1).astype(jnp.int32)

    # ---- kernel 1: log-probs of the extended labels, already in DP layout ---
    lp = project_logsoftmax_gather(hs_p, Wt, b2, W_ext, b_ext,
                                   n_blocks, NB, T_pad, tile_t, V_pad, CV)

    # ---- kernel 2: alpha DP -------------------------------------------------
    per_sample = pl.pallas_call(
        _ctc_alpha_kernel,
        out_shape=jax.ShapeDtypeStruct((N_pad, 1), f32),
        grid_spec=pltpu.PrefetchScalarGridSpec(
            num_scalar_prefetch=1,
            grid=(n_blocks, n_tc),
            in_specs=[
                pl.BlockSpec((T_chunk, NB, S_PAD),
                             lambda nb, c, tm: (nb * n_tc + c, 0, 0)),
                pl.BlockSpec((NB, S_PAD), lambda nb, c, tm: (nb, 0)),
                pl.BlockSpec((NB, S_PAD), lambda nb, c, tm: (nb, 0)),
                pl.BlockSpec((NB, 1), lambda nb, c, tm: (nb, 0)),
            ],
            out_specs=pl.BlockSpec((NB, 1), lambda nb, c, tm: (nb, 0)),
            scratch_shapes=[pltpu.VMEM((NB, S_PAD), f32)]),
        compiler_params=pltpu.CompilerParams(
            dimension_semantics=("parallel", "arbitrary"),
            vmem_limit_bytes=64 * 1024 * 1024),
    )(block_tmax, lp, skip_add, end_add, hlen_vec)

    # padded rows are excluded from the reduction
    return jnp.sum(per_sample[:N]) / N


# ----------------------------------------------------------------------------
# Pure-numpy reference (for verification)
# ----------------------------------------------------------------------------
def _np_logsumexp(xs):
    xs = np.asarray(xs, dtype=np.float64)
    m = np.max(xs)
    if np.isneginf(m):
        return -np.inf
    return m + np.log(np.sum(np.exp(xs - m)))


def ref_ctc_loss(hs, hlens, ys, ylens, W, b):
    hs = np.asarray(hs, np.float64)
    W = np.asarray(W, np.float64)
    b = np.asarray(b, np.float64)
    N, T, _ = hs.shape
    logits = np.einsum("ntd,vd->ntv", hs, W) + b
    m = logits.max(-1, keepdims=True)
    logp = logits - (m + np.log(np.exp(logits - m).sum(-1, keepdims=True)))
    total = 0.0
    for n in range(N):
        Tn, Un = int(hlens[n]), int(ylens[n])
        ext = []
        for u in ys[n, :Un]:
            ext += [0, int(u)]
        ext += [0]
        S = len(ext)
        alpha = np.full(S, -np.inf)
        alpha[0] = logp[n, 0, 0]
        if S > 1:
            alpha[1] = logp[n, 0, ext[1]]
        for t in range(1, Tn):
            new = np.full(S, -np.inf)
            for s in range(S):
                cands = [alpha[s]]
                if s >= 1:
                    cands.append(alpha[s - 1])
                if s >= 2 and ext[s] != 0 and ext[s] != ext[s - 2]:
                    cands.append(alpha[s - 2])
                new[s] = _np_logsumexp(cands) + logp[n, t, ext[s]]
            alpha = new
        ends = [alpha[S - 1]] + ([alpha[S - 2]] if S >= 2 else [])
        loss_n = -_np_logsumexp(ends)
        if not np.isfinite(loss_n):
            loss_n = 0.0  # zero_infinity
        total += loss_n
    return total / N


# TODO(synk): greedy_search's itertools.groupby de-dup is host-side Python list
# post-processing; not implemented as a kernel.

if __name__ == "__main__":
    key = jax.random.PRNGKey(0)
    N, T, idim, odim, U = 2, 8, 32, 16, 4
    k1, k2, k3, k4 = jax.random.split(key, 4)

    hs = jax.random.normal(k1, (N, T, idim), jnp.float32)
    W = jax.random.normal(k2, (odim, idim), jnp.float32) * (1.0 / np.sqrt(idim))
    bias = jax.random.normal(k3, (odim,), jnp.float32) * 0.1
    ys = jax.random.randint(k4, (N, U), 1, odim, dtype=jnp.int32)
    hlens = jnp.array([T, T - 2], jnp.int32)
    ylens = jnp.array([U, U - 1], jnp.int32)

    loss = jax.jit(ctc_loss)(hs, hlens, ys, ylens, W, bias)
    loss = jax.block_until_ready(loss)

    ref = ref_ctc_loss(np.asarray(hs), np.asarray(hlens), np.asarray(ys),
                       np.asarray(ylens), np.asarray(W), np.asarray(bias))
    np.testing.assert_allclose(float(loss), float(ref), rtol=1e-3, atol=1e-3)
    print("KERNEL_OK")
</pallas_src>

<mosaic_0001>
module attributes {stable_mosaic.version = 11 : i64} {
  func.func @_proj_lse_gather_kernel(%arg0: i32, %arg1: i32, %arg2: i32, %arg3: memref<8x8x32xf32, #tpu.memory_space<vmem>>, %arg4: memref<32x128xf32, #tpu.memory_space<vmem>>, %arg5: memref<1x128xf32, #tpu.memory_space<vmem>>, %arg6: memref<8x128x32xf32, #tpu.memory_space<vmem>>, %arg7: memref<8x128xf32, #tpu.memory_space<vmem>>, %arg8: memref<8x8x128xf32, #tpu.memory_space<vmem>>, %arg9: memref<64x1xf32, #tpu.memory_space<vmem>>, %arg10: memref<64x1xf32, #tpu.memory_space<vmem>>, %arg11: memref<8x8x128xf32, #tpu.memory_space<vmem>>) attributes {dimension_semantics = [#tpu.dimension_semantics<parallel>, #tpu.dimension_semantics<parallel>, #tpu.dimension_semantics<arbitrary>], iteration_bounds = array<i64: 1, 1, 1>, scalar_prefetch = 0 : i64, scratch_operands = 3 : i64, tpu.core_type = #tpu.core_type<tc>, window_params = [{transform_indices = @transform_0, window_bounds = array<i64: 8, 8, 32>}, {transform_indices = @transform_1, window_bounds = array<i64: 32, 128>}, {transform_indices = @transform_2, window_bounds = array<i64: 1, 128>}, {transform_indices = @transform_3, window_bounds = array<i64: 8, 128, 32>}, {transform_indices = @transform_4, window_bounds = array<i64: 8, 128>}, {transform_indices = @transform_5, window_bounds = array<i64: 8, 8, 128>}]} {
    %c0_i32 = arith.constant 0 : i32
    %0 = arith.cmpi eq, %arg2, %c0_i32 : i32
    %1 = arith.extui %0 : i1 to i32
    %c0_i32_0 = arith.constant 0 : i32
    %2 = arith.cmpi ne, %1, %c0_i32_0 : i32
    scf.if %2 {
      %cst_21 = arith.constant -1.000000e+30 : f32
      %30 = vector.broadcast %cst_21 : f32 to vector<64x1xf32>
      %c0_22 = arith.constant 0 : index
      %c0_23 = arith.constant 0 : index
      %31 = vector.load %arg9[%c0_22, %c0_23] : memref<64x1xf32, #tpu.memory_space<vmem>>, vector<64x1xf32>
      tpu.vector_store %arg9[%c0_22, %c0_23], %30 {strides = array<i32>} : memref<64x1xf32, #tpu.memory_space<vmem>>, vector<64x1xf32>,
      %cst_24 = arith.constant 0.000000e+00 : f32
      %32 = vector.broadcast %cst_24 : f32 to vector<64x1xf32>
      %c0_25 = arith.constant 0 : index
      %c0_26 = arith.constant 0 : index
      %33 = vector.load %arg10[%c0_25, %c0_26] : memref<64x1xf32, #tpu.memory_space<vmem>>, vector<64x1xf32>
      tpu.vector_store %arg10[%c0_25, %c0_26], %32 {strides = array<i32>} : memref<64x1xf32, #tpu.memory_space<vmem>>, vector<64x1xf32>,
      %c0_27 = arith.constant 0 : index
      %c0_28 = arith.constant 0 : index
      %c0_29 = arith.constant 0 : index
      %34 = vector.load %arg3[%c0_27, %c0_28, %c0_29] : memref<8x8x32xf32, #tpu.memory_space<vmem>>, vector<8x8x32xf32>
      %c0_30 = arith.constant 0 : index
      %c0_31 = arith.constant 0 : index
      %c0_32 = arith.constant 0 : index
      %35 = vector.load %arg6[%c0_30, %c0_31, %c0_32] : memref<8x128x32xf32, #tpu.memory_space<vmem>>, vector<8x128x32xf32>
      "tpu.trace_start"() <{level = 10 : i32, message = "ntd,nsd->nts"}> : () -> ()
      %cst_33 = arith.constant dense<0.000000e+00> : vector<8x8x128xf32>
      %36 = tpu.matmul %34, %35, %cst_33 {dimension_numbers = #tpu.dot_dimension_numbers<[2], [2], [1], [1], [0, 0, 0, 1, 1, 1], [0], [0]>} : vector<8x8x32xf32>, vector<8x128x32xf32>, vector<8x8x128xf32> -> vector<8x8x128xf32>
      "tpu.trace_stop"() : () -> ()
      %c0_34 = arith.constant 0 : index
      %c0_35 = arith.constant 0 : index
      %37 = vector.load %arg7[%c0_34, %c0_35] : memref<8x128xf32, #tpu.memory_space<vmem>>, vector<8x128xf32>
      %38 = vector.shape_cast %37 : vector<8x128xf32> to vector<8x1x128xf32>
      %39 = vector.broadcast %38 : vector<8x1x128xf32> to vector<8x8x128xf32>
      %40 = arith.addf %36, %39 : vector<8x8x128xf32>
      %c0_36 = arith.constant 0 : index
      %c0_37 = arith.constant 0 : index
      %c0_38 = arith.constant 0 : index
      %41 = vector.load %arg11[%c0_36, %c0_37, %c0_38] : memref<8x8x128xf32, #tpu.memory_space<vmem>>, vector<8x8x128xf32>
      tpu.vector_store %arg11[%c0_36, %c0_37, %c0_38], %40 {strides = array<i32>} : memref<8x8x128xf32, #tpu.memory_space<vmem>>, vector<8x8x128xf32>,
    } else {
    }
    %c0 = arith.constant 0 : index
    %c0_1 = arith.constant 0 : index
    %c0_2 = arith.constant 0 : index
    %3 = vector.load %arg3[%c0, %c0_1, %c0_2] : memref<8x8x32xf32, #tpu.memory_space<vmem>>, vector<8x8x32xf32>
    %4 = vector.shape_cast %3 : vector<8x8x32xf32> to vector<64x32xf32>
    %c0_3 = arith.constant 0 : index
    %c0_4 = arith.constant 0 : index
    %5 = vector.load %arg4[%c0_3, %c0_4] : memref<32x128xf32, #tpu.memory_space<vmem>>, vector<32x128xf32>
    %cst = arith.constant dense<0.000000e+00> : vector<64x128xf32>
    %6 = tpu.matmul %4, %5, %cst {dimension_numbers = #tpu.dot_dimension_numbers<[1], [0], [0], [1], [0, 0, 1, 1], [], []>} : vector<64x32xf32>, vector<32x128xf32>, vector<64x128xf32> -> vector<64x128xf32>
    %c0_5 = arith.constant 0 : index
    %c0_6 = arith.constant 0 : index
    %7 = vector.load %arg5[%c0_5, %c0_6] : memref<1x128xf32, #tpu.memory_space<vmem>>, vector<1x128xf32>
    %8 = vector.broadcast %7 : vector<1x128xf32> to vector<64x128xf32>
    %9 = arith.addf %6, %8 : vector<64x128xf32>
    %cst_7 = arith.constant dense<0xFF800000> : vector<64xf32>
    %10 = vector.multi_reduction <maximumf>, %9, %cst_7 [1] : vector<64x128xf32> to vector<64xf32>
    %11 = vector.shape_cast %10 : vector<64xf32> to vector<64x1xf32>
    %c0_8 = arith.constant 0 : index
    %c0_9 = arith.constant 0 : index
    %12 = vector.load %arg9[%c0_8, %c0_9] : memref<64x1xf32, #tpu.memory_space<vmem>>, vector<64x1xf32>
    %13 = arith.maximumf %12, %11 : vector<64x1xf32>
    %c0_10 = arith.constant 0 : index
    %c0_11 = arith.constant 0 : index
    %14 = vector.load %arg10[%c0_10, %c0_11] : memref<64x1xf32, #tpu.memory_space<vmem>>, vector<64x1xf32>
    %c0_12 = arith.constant 0 : index
    %c0_13 = arith.constant 0 : index
    %15 = vector.load %arg9[%c0_12, %c0_13] : memref<64x1xf32, #tpu.memory_space<vmem>>, vector<64x1xf32>
    %16 = arith.subf %15, %13 : vector<64x1xf32>
    %17 = math.exp %16 : vector<64x1xf32>
    %18 = arith.mulf %14, %17 : vector<64x1xf32>
    %19 = vector.broadcast %13 : vector<64x1xf32> to vector<64x128xf32>
    %20 = arith.subf %9, %19 : vector<64x128xf32>
    %21 = math.exp %20 : vector<64x128xf32>
    %cst_14 = arith.constant dense<0.000000e+00> : vector<64xf32>
    %22 = vector.multi_reduction <add>, %21, %cst_14 [1] : vector<64x128xf32> to vector<64xf32>
    %23 = vector.shape_cast %22 : vector<64xf32> to vector<64x1xf32>
    %24 = arith.addf %18, %23 : vector<64x1xf32>
    %c0_15 = arith.constant 0 : index
    %c0_16 = arith.constant 0 : index
    %25 = vector.load %arg10[%c0_15, %c0_16] : memref<64x1xf32, #tpu.memory_space<vmem>>, vector<64x1xf32>
    tpu.vector_store %arg10[%c0_15, %c0_16], %24 {strides = array<i32>} : memref<64x1xf32, #tpu.memory_space<vmem>>, vector<64x1xf32>,
    %c0_17 = arith.constant 0 : index
    %c0_18 = arith.constant 0 : index
    %26 = vector.load %arg9[%c0_17, %c0_18] : memref<64x1xf32, #tpu.memory_space<vmem>>, vector<64x1xf32>
    tpu.vector_store %arg9[%c0_17, %c0_18], %13 {strides = array<i32>} : memref<64x1xf32, #tpu.memory_space<vmem>>, vector<64x1xf32>,
    %c0_i32_19 = arith.constant 0 : i32
    %27 = arith.cmpi eq, %arg2, %c0_i32_19 : i32
    %28 = arith.extui %27 : i1 to i32
    %c0_i32_20 = arith.constant 0 : i32
    %29 = arith.cmpi ne, %28, %c0_i32_20 : i32
    scf.if %29 {
      %c0_21 = arith.constant 0 : index
      %c0_22 = arith.constant 0 : index
      %30 = vector.load %arg9[%c0_21, %c0_22] : memref<64x1xf32, #tpu.memory_space<vmem>>, vector<64x1xf32>
      %c0_23 = arith.constant 0 : index
      %c0_24 = arith.constant 0 : index
      %31 = vector.load %arg10[%c0_23, %c0_24] : memref<64x1xf32, #tpu.memory_space<vmem>>, vector<64x1xf32>
      %32 = math.log %31 : vector<64x1xf32>
      %33 = arith.addf %30, %32 : vector<64x1xf32>
      %c0_25 = arith.constant 0 : index
      %c0_26 = arith.constant 0 : index
      %c0_27 = arith.constant 0 : index
      %34 = vector.load %arg11[%c0_25, %c0_26, %c0_27] : memref<8x8x128xf32, #tpu.memory_space<vmem>>, vector<8x8x128xf32>
      %35 = vector.shape_cast %33 : vector<64x1xf32> to vector<8x8x1xf32>
      %36 = vector.broadcast %35 : vector<8x8x1xf32> to vector<8x8x128xf32>
      %37 = arith.subf %34, %36 : vector<8x8x128xf32>
      %38 = vector.extract_strided_slice %37 {offsets = [0, 0, 0], sizes = [8, 1, 128], strides = [1, 1, 1]} : vector<8x8x128xf32> to vector<8x1x128xf32>
      %39 = vector.shape_cast %38 : vector<8x1x128xf32> to vector<8x128xf32>
      %c0_28 = arith.constant 0 : index
      %c0_29 = arith.constant 0 : index
      %c0_30 = arith.constant 0 : index
      %40 = vector.load %arg8[%c0_28, %c0_29, %c0_30] : memref<8x8x128xf32, #tpu.memory_space<vmem>>, vector<1x8x128xf32>
      %41 = vector.shape_cast %40 : vector<1x8x128xf32> to vector<8x128xf32>
      %42 = vector.shape_cast %39 : vector<8x128xf32> to vector<1x8x128xf32>
      tpu.vector_store %arg8[%c0_28, %c0_29, %c0_30], %42 {strides = array<i32>} : memref<8x8x128xf32, #tpu.memory_space<vmem>>, vector<1x8x128xf32>,
      %43 = vector.extract_strided_slice %37 {offsets = [0, 1, 0], sizes = [8, 1, 128], strides = [1, 1, 1]} : vector<8x8x128xf32> to vector<8x1x128xf32>
      %44 = vector.shape_cast %43 : vector<8x1x128xf32> to vector<8x128xf32>
      %c1 = arith.constant 1 : index
      %c0_31 = arith.constant 0 : index
      %c0_32 = arith.constant 0 : index
      %45 = vector.load %arg8[%c1, %c0_31, %c0_32] : memref<8x8x128xf32, #tpu.memory_space<vmem>>, vector<1x8x128xf32>
      %46 = vector.shape_cast %45 : vector<1x8x128xf32> to vector<8x128xf32>
      %47 = vector.shape_cast %44 : vector<8x128xf32> to vector<1x8x128xf32>
      tpu.vector_store %arg8[%c1, %c0_31, %c0_32], %47 {strides = array<i32>} : memref<8x8x128xf32, #tpu.memory_space<vmem>>, vector<1x8x128xf32>,
      %48 = vector.extract_strided_slice %37 {offsets = [0, 2, 0], sizes = [8, 1, 128], strides = [1, 1, 1]} : vector<8x8x128xf32> to vector<8x1x128xf32>
      %49 = vector.shape_cast %48 : vector<8x1x128xf32> to vector<8x128xf32>
      %c2 = arith.constant 2 : index
      %c0_33 = arith.constant 0 : index
      %c0_34 = arith.constant 0 : index
      %50 = vector.load %arg8[%c2, %c0_33, %c0_34] : memref<8x8x128xf32, #tpu.memory_space<vmem>>, vector<1x8x128xf32>
      %51 = vector.shape_cast %50 : vector<1x8x128xf32> to vector<8x128xf32>
      %52 = vector.shape_cast %49 : vector<8x128xf32> to vector<1x8x128xf32>
      tpu.vector_store %arg8[%c2, %c0_33, %c0_34], %52 {strides = array<i32>} : memref<8x8x128xf32, #tpu.memory_space<vmem>>, vector<1x8x128xf32>,
      %53 = vector.extract_strided_slice %37 {offsets = [0, 3, 0], sizes = [8, 1, 128], strides = [1, 1, 1]} : vector<8x8x128xf32> to vector<8x1x128xf32>
      %54 = vector.shape_cast %53 : vector<8x1x128xf32> to vector<8x128xf32>
      %c3 = arith.constant 3 : index
      %c0_35 = arith.constant 0 : index
      %c0_36 = arith.constant 0 : index
      %55 = vector.load %arg8[%c3, %c0_35, %c0_36] : memref<8x8x128xf32, #tpu.memory_space<vmem>>, vector<1x8x128xf32>
      %56 = vector.shape_cast %55 : vector<1x8x128xf32> to vector<8x128xf32>
      %57 = vector.shape_cast %54 : vector<8x128xf32> to vector<1x8x128xf32>
      tpu.vector_store %arg8[%c3, %c0_35, %c0_36], %57 {strides = array<i32>} : memref<8x8x128xf32, #tpu.memory_space<vmem>>, vector<1x8x128xf32>,
      %58 = vector.extract_strided_slice %37 {offsets = [0, 4, 0], sizes = [8, 1, 128], strides = [1, 1, 1]} : vector<8x8x128xf32> to vector<8x1x128xf32>
      %59 = vector.shape_cast %58 : vector<8x1x128xf32> to vector<8x128xf32>
      %c4 = arith.constant 4 : index
      %c0_37 = arith.constant 0 : index
      %c0_38 = arith.constant 0 : index
      %60 = vector.load %arg8[%c4, %c0_37, %c0_38] : memref<8x8x128xf32, #tpu.memory_space<vmem>>, vector<1x8x128xf32>
      %61 = vector.shape_cast %60 : vector<1x8x128xf32> to vector<8x128xf32>
      %62 = vector.shape_cast %59 : vector<8x128xf32> to vector<1x8x128xf32>
      tpu.vector_store %arg8[%c4, %c0_37, %c0_38], %62 {strides = array<i32>} : memref<8x8x128xf32, #tpu.memory_space<vmem>>, vector<1x8x128xf32>,
      %63 = vector.extract_strided_slice %37 {offsets = [0, 5, 0], sizes = [8, 1, 128], strides = [1, 1, 1]} : vector<8x8x128xf32> to vector<8x1x128xf32>
      %64 = vector.shape_cast %63 : vector<8x1x128xf32> to vector<8x128xf32>
      %c5 = arith.constant 5 : index
      %c0_39 = arith.constant 0 : index
      %c0_40 = arith.constant 0 : index
      %65 = vector.load %arg8[%c5, %c0_39, %c0_40] : memref<8x8x128xf32, #tpu.memory_space<vmem>>, vector<1x8x128xf32>
      %66 = vector.shape_cast %65 : vector<1x8x128xf32> to vector<8x128xf32>
      %67 = vector.shape_cast %64 : vector<8x128xf32> to vector<1x8x128xf32>
      tpu.vector_store %arg8[%c5, %c0_39, %c0_40], %67 {strides = array<i32>} : memref<8x8x128xf32, #tpu.memory_space<vmem>>, vector<1x8x128xf32>,
      %68 = vector.extract_strided_slice %37 {offsets = [0, 6, 0], sizes = [8, 1, 128], strides = [1, 1, 1]} : vector<8x8x128xf32> to vector<8x1x128xf32>
      %69 = vector.shape_cast %68 : vector<8x1x128xf32> to vector<8x128xf32>
      %c6 = arith.constant 6 : index
      %c0_41 = arith.constant 0 : index
      %c0_42 = arith.constant 0 : index
      %70 = vector.load %arg8[%c6, %c0_41, %c0_42] : memref<8x8x128xf32, #tpu.memory_space<vmem>>, vector<1x8x128xf32>
      %71 = vector.shape_cast %70 : vector<1x8x128xf32> to vector<8x128xf32>
      %72 = vector.shape_cast %69 : vector<8x128xf32> to vector<1x8x128xf32>
      tpu.vector_store %arg8[%c6, %c0_41, %c0_42], %72 {strides = array<i32>} : memref<8x8x128xf32, #tpu.memory_space<vmem>>, vector<1x8x128xf32>,
      %73 = vector.extract_strided_slice %37 {offsets = [0, 7, 0], sizes = [8, 1, 128], strides = [1, 1, 1]} : vector<8x8x128xf32> to vector<8x1x128xf32>
      %74 = vector.shape_cast %73 : vector<8x1x128xf32> to vector<8x128xf32>
      %c7 = arith.constant 7 : index
      %c0_43 = arith.constant 0 : index
      %c0_44 = arith.constant 0 : index
      %75 = vector.load %arg8[%c7, %c0_43, %c0_44] : memref<8x8x128xf32, #tpu.memory_space<vmem>>, vector<1x8x128xf32>
      %76 = vector.shape_cast %75 : vector<1x8x128xf32> to vector<8x128xf32>
      %77 = vector.shape_cast %74 : vector<8x128xf32> to vector<1x8x128xf32>
      tpu.vector_store %arg8[%c7, %c0_43, %c0_44], %77 {strides = array<i32>} : memref<8x8x128xf32, #tpu.memory_space<vmem>>, vector<1x8x128xf32>,
    } else {
    }
    return
  }
  func.func @transform_0(%arg0: i32, %arg1: i32, %arg2: i32) -> (i32, i32, i32) {
    %c0_i32 = arith.constant 0 : i32
    %c0_i32_0 = arith.constant 0 : i32
    return %arg0, %arg1, %c0_i32 : i32, i32, i32
  }
  func.func @transform_1(%arg0: i32, %arg1: i32, %arg2: i32) -> (i32, i32) {
    %c0_i32 = arith.constant 0 : i32
    %c0_i32_0 = arith.constant 0 : i32
    return %c0_i32, %arg2 : i32, i32
  }
  func.func @transform_2(%arg0: i32, %arg1: i32, %arg2: i32) -> (i32, i32) {
    %c0_i32 = arith.constant 0 : i32
    %c0_i32_0 = arith.constant 0 : i32
    return %c0_i32, %arg2 : i32, i32
  }
  func.func @transform_3(%arg0: i32, %arg1: i32, %arg2: i32) -> (i32, i32, i32) {
    %c0_i32 = arith.constant 0 : i32
    %c0_i32_0 = arith.constant 0 : i32
    %c0_i32_1 = arith.constant 0 : i32
    return %arg0, %c0_i32, %c0_i32_0 : i32, i32, i32
  }
  func.func @transform_4(%arg0: i32, %arg1: i32, %arg2: i32) -> (i32, i32) {
    %c0_i32 = arith.constant 0 : i32
    %c0_i32_0 = arith.constant 0 : i32
    return %arg0, %c0_i32 : i32, i32
  }
  func.func @transform_5(%arg0: i32, %arg1: i32, %arg2: i32) -> (i32, i32, i32) {
    %c1_i32 = arith.constant 1 : i32
    %0 = arith.muli %arg0, %c1_i32 : i32
    %1 = arith.addi %0, %arg1 : i32
    %c0_i32 = arith.constant 0 : i32
    %c0_i32_0 = arith.constant 0 : i32
    %c0_i32_1 = arith.constant 0 : i32
    return %1, %c0_i32, %c0_i32_0 : i32, i32, i32
  }
}

module attributes {stable_mosaic.version = 11 : i64} {
  func.func @_ctc_alpha_kernel(%arg0: i32, %arg1: i32, %arg2: memref<1xi32, #tpu.memory_space<smem>>, %arg3: memref<8x8x128xf32, #tpu.memory_space<vmem>>, %arg4: memref<8x128xf32, #tpu.memory_space<vmem>>, %arg5: memref<8x128xf32, #tpu.memory_space<vmem>>, %arg6: memref<8x1xi32, #tpu.memory_space<vmem>>, %arg7: memref<8x1xf32, #tpu.memory_space<vmem>>, %arg8: memref<8x128xf32, #tpu.memory_space<vmem>>) attributes {dimension_semantics = [#tpu.dimension_semantics<parallel>, #tpu.dimension_semantics<arbitrary>], iteration_bounds = array<i64: 1, 1>, scalar_prefetch = 1 : i64, scratch_operands = 1 : i64, tpu.core_type = #tpu.core_type<tc>, window_params = [{transform_indices = @transform_0, window_bounds = array<i64: 8, 8, 128>}, {transform_indices = @transform_1, window_bounds = array<i64: 8, 128>}, {transform_indices = @transform_2, window_bounds = array<i64: 8, 128>}, {transform_indices = @transform_3, window_bounds = array<i64: 8, 1>}, {transform_indices = @transform_4, window_bounds = array<i64: 8, 1>}]} {
    %0 = tpu.iota {dimensions = array<i32: 1>} : vector<8x128xi32>
    %c0 = arith.constant 0 : index
    %c0_0 = arith.constant 0 : index
    %1 = vector.load %arg4[%c0, %c0_0] : memref<8x128xf32, #tpu.memory_space<vmem>>, vector<8x128xf32>
    %c0_1 = arith.constant 0 : index
    %c0_2 = arith.constant 0 : index
    %2 = vector.load %arg6[%c0_1, %c0_2] : memref<8x1xi32, #tpu.memory_space<vmem>>, vector<8x1xi32>
    %3 = arith.index_cast %arg0 : i32 to index
    %4 = memref.load %arg2[%3] : memref<1xi32, #tpu.memory_space<smem>>
    %c8_i32 = arith.constant 8 : i32
    %5 = arith.muli %arg1, %c8_i32 : i32
    %c0_i32 = arith.constant 0 : i32
    %6 = arith.cmpi eq, %arg1, %c0_i32 : i32
    %7 = arith.extui %6 : i1 to i32
    %c0_i32_3 = arith.constant 0 : i32
    %8 = arith.cmpi ne, %7, %c0_i32_3 : i32
    scf.if %8 {
      %c2_i32 = arith.constant 2 : i32
      %22 = vector.broadcast %c2_i32 : i32 to vector<8x128xi32>
      %23 = arith.cmpi slt, %0, %22 : vector<8x128xi32>
      %c0_13 = arith.constant 0 : index
      %c0_14 = arith.constant 0 : index
      %c0_15 = arith.constant 0 : index
      %24 = vector.load %arg3[%c0_13, %c0_14, %c0_15] : memref<8x8x128xf32, #tpu.memory_space<vmem>>, vector<1x8x128xf32>
      %25 = vector.shape_cast %24 : vector<1x8x128xf32> to vector<8x128xf32>
      %cst = arith.constant -1.000000e+30 : f32
      %26 = vector.broadcast %cst : f32 to vector<8x128xf32>
      %27 = arith.select %23, %25, %26 : vector<8x128xi1>, vector<8x128xf32>
      %c0_16 = arith.constant 0 : index
      %c0_17 = arith.constant 0 : index
      %28 = vector.load %arg8[%c0_16, %c0_17] : memref<8x128xf32, #tpu.memory_space<vmem>>, vector<8x128xf32>
      tpu.vector_store %arg8[%c0_16, %c0_17], %27 {strides = array<i32>} : memref<8x128xf32, #tpu.memory_space<vmem>>, vector<8x128xf32>,
    } else {
    }
    %c0_i32_4 = arith.constant 0 : i32
    %9 = arith.cmpi eq, %arg1, %c0_i32_4 : i32
    %10 = arith.extui %9 : i1 to i32
    %11 = arith.subi %4, %5 : i32
    %c0_i32_5 = arith.constant 0 : i32
    %c8_i32_6 = arith.constant 8 : i32
    %12 = arith.maxsi %c0_i32_5, %11 : i32
    %13 = arith.minsi %c8_i32_6, %12 : i32
    %c0_7 = arith.constant 0 : index
    %c0_8 = arith.constant 0 : index
    %14 = vector.load %arg8[%c0_7, %c0_8] : memref<8x128xf32, #tpu.memory_space<vmem>>, vector<8x128xf32>
    %15 = arith.subi %13, %10 : i32
    %16 = arith.addi %10, %15 : i32
    %c1_i32 = arith.constant 1 : i32
    %17 = scf.for %arg9 = %10 to %16 step %c1_i32 iter_args(%arg10 = %14) -> (vector<8x128xf32>)  : i32 {
      %22 = arith.index_cast %arg9 : i32 to index
      %c0_13 = arith.constant 0 : index
      %c0_14 = arith.constant 0 : index
      %23 = vector.load %arg3[%22, %c0_13, %c0_14] : memref<8x8x128xf32, #tpu.memory_space<vmem>>, vector<1x8x128xf32>
      %24 = vector.shape_cast %23 : vector<1x8x128xf32> to vector<8x128xf32>
      %c1_i32_15 = arith.constant 1 : i32
      %25 = vector.broadcast %c1_i32_15 : i32 to vector<8x128xi32>
      %26 = arith.cmpi sge, %0, %25 : vector<8x128xi32>
      %c1_i32_16 = arith.constant 1 : i32
      %27 = tpu.dynamic_rotate %arg10 by %c1_i32_16 dim 1 : vector<8x128xf32>, i32 -> vector<8x128xf32>
      %cst = arith.constant -1.000000e+30 : f32
      %28 = vector.broadcast %cst : f32 to vector<8x128xf32>
      %29 = arith.select %26, %27, %28 : vector<8x128xi1>, vector<8x128xf32>
      %c2_i32 = arith.constant 2 : i32
      %30 = vector.broadcast %c2_i32 : i32 to vector<8x128xi32>
      %31 = arith.cmpi sge, %0, %30 : vector<8x128xi32>
      %c2_i32_17 = arith.constant 2 : i32
      %32 = tpu.dynamic_rotate %arg10 by %c2_i32_17 dim 1 : vector<8x128xf32>, i32 -> vector<8x128xf32>
      %cst_18 = arith.constant -1.000000e+30 : f32
      %33 = vector.broadcast %cst_18 : f32 to vector<8x128xf32>
      %34 = arith.select %31, %32, %33 : vector<8x128xi1>, vector<8x128xf32>
      %35 = arith.addf %34, %1 : vector<8x128xf32>
      %36 = arith.maximumf %arg10, %29 : vector<8x128xf32>
      %37 = arith.maximumf %36, %35 : vector<8x128xf32>
      %38 = arith.subf %arg10, %37 : vector<8x128xf32>
      %39 = math.exp %38 : vector<8x128xf32>
      %40 = arith.subf %29, %37 : vector<8x128xf32>
      %41 = math.exp %40 : vector<8x128xf32>
      %42 = arith.addf %39, %41 : vector<8x128xf32>
      %43 = arith.subf %35, %37 : vector<8x128xf32>
      %44 = math.exp %43 : vector<8x128xf32>
      %45 = arith.addf %42, %44 : vector<8x128xf32>
      %46 = math.log %45 : vector<8x128xf32>
      %47 = arith.addf %37, %46 : vector<8x128xf32>
      %48 = arith.addf %47, %24 : vector<8x128xf32>
      %cst_19 = arith.constant -1.000000e+30 : f32
      %49 = vector.broadcast %cst_19 : f32 to vector<8x128xf32>
      %50 = arith.maximumf %48, %49 : vector<8x128xf32>
      %51 = arith.addi %5, %arg9 : i32
      %52 = vector.broadcast %51 : i32 to vector<8x1xi32>
      %53 = arith.cmpi slt, %52, %2 : vector<8x1xi32>
      %54 = vector.shape_cast %53 : vector<8x1xi1> to vector<8x1xi1>
      %55 = vector.broadcast %54 : vector<8x1xi1> to vector<8x128xi1>
      %56 = arith.select %55, %50, %arg10 : vector<8x128xi1>, vector<8x128xf32>
      scf.yield %56 : vector<8x128xf32>
    }
    %c0_9 = arith.constant 0 : index
    %c0_10 = arith.constant 0 : index
    %18 = vector.load %arg8[%c0_9, %c0_10] : memref<8x128xf32, #tpu.memory_space<vmem>>, vector<8x128xf32>
    tpu.vector_store %arg8[%c0_9, %c0_10], %17 {strides = array<i32>} : memref<8x128xf32, #tpu.memory_space<vmem>>, vector<8x128xf32>,
    %c0_i32_11 = arith.constant 0 : i32
    %19 = arith.cmpi eq, %arg1, %c0_i32_11 : i32
    %20 = arith.extui %19 : i1 to i32
    %c0_i32_12 = arith.constant 0 : i32
    %21 = arith.cmpi ne, %20, %c0_i32_12 : i32
    scf.if %21 {
      %c0_13 = arith.constant 0 : index
      %c0_14 = arith.constant 0 : index
      %22 = vector.load %arg8[%c0_13, %c0_14] : memref<8x128xf32, #tpu.memory_space<vmem>>, vector<8x128xf32>
      %c0_15 = arith.constant 0 : index
      %c0_16 = arith.constant 0 : index
      %23 = vector.load %arg5[%c0_15, %c0_16] : memref<8x128xf32, #tpu.memory_space<vmem>>, vector<8x128xf32>
      %24 = arith.addf %22, %23 : vector<8x128xf32>
      %cst = arith.constant dense<0xFF800000> : vector<8xf32>
      %25 = vector.multi_reduction <maximumf>, %24, %cst [1] : vector<8x128xf32> to vector<8xf32>
      %26 = vector.shape_cast %25 : vector<8xf32> to vector<8x1xf32>
      %27 = vector.broadcast %26 : vector<8x1xf32> to vector<8x128xf32>
      %28 = arith.subf %24, %27 : vector<8x128xf32>
      %29 = math.exp %28 : vector<8x128xf32>
      %cst_17 = arith.constant dense<0.000000e+00> : vector<8xf32>
      %30 = vector.multi_reduction <add>, %29, %cst_17 [1] : vector<8x128xf32> to vector<8xf32>
      %31 = vector.shape_cast %30 : vector<8xf32> to vector<8x1xf32>
      %32 = math.log %31 : vector<8x1xf32>
      %33 = arith.addf %26, %32 : vector<8x1xf32>
      %cst_18 = arith.constant -5.000000e+29 : f32
      %34 = vector.broadcast %cst_18 : f32 to vector<8x1xf32>
      %35 = arith.cmpf ogt, %33, %34 : vector<8x1xf32>
      %cst_19 = arith.constant 0.000000e+00 : f32
      %36 = vector.broadcast %cst_19 : f32 to vector<8x1xf32>
      %37 = arith.subf %36, %33 : vector<8x1xf32>
      %cst_20 = arith.constant 0.000000e+00 : f32
      %38 = vector.broadcast %cst_20 : f32 to vector<8x1xf32>
      %39 = arith.select %35, %37, %38 : vector<8x1xi1>, vector<8x1xf32>
      %c0_21 = arith.constant 0 : index
      %c0_22 = arith.constant 0 : index
      %40 = vector.load %arg7[%c0_21, %c0_22] : memref<8x1xf32, #tpu.memory_space<vmem>>, vector<8x1xf32>
      tpu.vector_store %arg7[%c0_21, %c0_22], %39 {strides = array<i32>} : memref<8x1xf32, #tpu.memory_space<vmem>>, vector<8x1xf32>,
    } else {
    }
    return
  }
  func.func @transform_0(%arg0: i32, %arg1: i32, %arg2: memref<1xi32, #tpu.memory_space<smem>>) -> (i32, i32, i32) {
    %c1_i32 = arith.constant 1 : i32
    %0 = arith.muli %arg0, %c1_i32 : i32
    %1 = arith.addi %0, %arg1 : i32
    %c0_i32 = arith.constant 0 : i32
    %c0_i32_0 = arith.constant 0 : i32
    %c0_i32_1 = arith.constant 0 : i32
    return %1, %c0_i32, %c0_i32_0 : i32, i32, i32
  }
  func.func @transform_1(%arg0: i32, %arg1: i32, %arg2: memref<1xi32, #tpu.memory_space<smem>>) -> (i32, i32) {
    %c0_i32 = arith.constant 0 : i32
    %c0_i32_0 = arith.constant 0 : i32
    return %arg0, %c0_i32 : i32, i32
  }
  func.func @transform_2(%arg0: i32, %arg1: i32, %arg2: memref<1xi32, #tpu.memory_space<smem>>) -> (i32, i32) {
    %c0_i32 = arith.constant 0 : i32
    %c0_i32_0 = arith.constant 0 : i32
    return %arg0, %c0_i32 : i32, i32
  }
  func.func @transform_3(%arg0: i32, %arg1: i32, %arg2: memref<1xi32, #tpu.memory_space<smem>>) -> (i32, i32) {
    %c0_i32 = arith.constant 0 : i32
    %c0_i32_0 = arith.constant 0 : i32
    return %arg0, %c0_i32 : i32, i32
  }
  func.func @transform_4(%arg0: i32, %arg1: i32, %arg2: memref<1xi32, #tpu.memory_space<smem>>) -> (i32, i32) {
    %c0_i32 = arith.constant 0 : i32
    %c0_i32_0 = arith.constant 0 : i32
    return %arg0, %c0_i32 : i32, i32
  }
}

</mosaic_0001>

<llo_original>
// kernel: ctc_loss.3
$region0: #{ctc_loss.3}
  #allocation0 [shape = 'u32[]', space=smem, size = 0x4, offset = 0x4, fixed_abs, tag = 'smem constant byte address 0x4 - core index']
  #allocation1 [shape = 'u32[144,128]{1,0:T(1,128)}', space=vmem, size = 0x12000, scoped, tag = 'internal scratch']
  #allocation2 [shape = 'f32[8,128]{1,0:T(8,128)}', space=vmem, size = 0x1000, scoped, tag = 'scratch operand']
  #allocation3 [shape = 's32[1]{0}', space=sflag, size = 0x4, scoped, tag = 'scoped memory for ctc_loss.3']
  #allocation4 [shape = 's32[1]{0:T(128)S(6)}', space=smem, size = 0x200, scoped, tag = 'prefetched SMEM operand 0']
  %s0 = inlined_call_operand.<no memory space> [shape: s32[1], index: 0, kind: input, shape index: {}]
  %s1 = inlined_call_operand.hbm [shape: f32[8,8,128], index: 1, kind: input, shape index: {}]
  %s2 = inlined_call_operand.hbm [shape: f32[8,128], index: 2, kind: input, shape index: {}]
  %s3 = inlined_call_operand.hbm [shape: f32[8,128], index: 3, kind: input, shape index: {}]
  %s4 = inlined_call_operand.hbm [shape: s32[8,1], index: 4, kind: input, shape index: {}]
  %s5 = inlined_call_operand.hbm [shape: f32[8,1], index: 5, kind: output, shape index: {}]
  %s6 = sld [smem:[#allocation0]]
  $region57: #{ctc_loss.3} parent=0
    _
  %s8 = ssub.s32 1, %s6
  %s9 = scalar_select 0, %s8, %s6
  %10 = sst [smem:[#allocation4]] %s0
  $region1: #{ctc_loss.3} parent=0
    #allocation5 [shape = 'u8[32768]{0}', space=vmem, size = 0x8000, scoped, tag = 'input window, operand 1, single buffered']
    #allocation6 [shape = 's32[1]{0}', space=sflag, size = 0x4, scoped, tag = 'scoped memory for ctc_loss.3']
    #allocation7 [shape = 's32[1]{0}', space=sflag, size = 0x4, scoped, tag = 'scoped memory for ctc_loss.3']
    #allocation8 [shape = 'u8[4096]{0}', space=vmem, size = 0x1000, scoped, tag = 'input window, operand 2, single buffered']
    #allocation9 [shape = 's32[1]{0}', space=sflag, size = 0x4, scoped, tag = 'scoped memory for ctc_loss.3']
    #allocation10 [shape = 'u8[4096]{0}', space=vmem, size = 0x1000, scoped, tag = 'input window, operand 3, single buffered']
    #allocation11 [shape = 'u8[4096]{0}', space=vmem, size = 0x1000, scoped, tag = 'input window, operand 4, single buffered']
    #allocation12 [shape = 's32[1]{0}', space=sflag, size = 0x4, scoped, tag = 'scoped memory for ctc_loss.3']
    #allocation13 [shape = 'u8[4096]{0}', space=vmem, size = 0x1000, scoped, tag = 'output window, operand 0, single buffered']
    %11 = vsyncpa [#allocation6], 0
    %12 = vsyncpa [#allocation9], 0
    %13 = vsyncpa [#allocation12], 0
    %14 = vsyncpa [#allocation7], 0
    // Predicated region
    $region2: #{ctc_loss.3} parent=1 // pred_check
      _
    $region3: #{ctc_loss.3} parent=1 // pred_check_branch
      %16 = sbr.rel (0) target = $region5
    $region4: #{ctc_loss.3} parent=1 // pred_region
      %s17 = sadd.s32 0, 0
      %s18 = smul.u32 8, %s17
      %s20 = ssub.s32 1024, 1024
      %21 = vsyncadd [#allocation6], %s20
      %s22 = smul.addr %s18, 128
      %s23 = scalar_lea.hbm %s1, %s22
      %s24 = sshll.u32 [#allocation5], 4
      %s25 = int_to_ptr.vmem [resolvable:$true] %s24
      %30 = dma.hbm_to_vmem [thread:$0]  %s23, 1024, %s25, [#allocation6], 128, 128, 8
    $region5: #{ctc_loss.3} parent=1 // pred_fallthru
      _
    // Predicated region
    $region6: #{ctc_loss.3} parent=1 // pred_check
      _
    $region7: #{ctc_loss.3} parent=1 // pred_check_branch
      %32 = sbr.rel (0) target = $region9
    $region8: #{ctc_loss.3} parent=1 // pred_region
      %s34 = ssub.s32 128, 128
      %35 = vsyncadd [#allocation9], %s34
      %s37 = sshll.u32 [#allocation8], 4
      %s38 = int_to_ptr.vmem [resolvable:$true] %s37
      %40 = dma.hbm_to_vmem [thread:$0]  %s2, 128, %s38, [#allocation9]
    $region9: #{ctc_loss.3} parent=1 // pred_fallthru
      _
    // Predicated region
    $region10: #{ctc_loss.3} parent=1 // pred_check
      _
    $region11: #{ctc_loss.3} parent=1 // pred_check_branch
      %42 = sbr.rel (0) target = $region13
    $region12: #{ctc_loss.3} parent=1 // pred_region
      %s44 = ssub.s32 128, 128
      %45 = vsyncadd [#allocation9], %s44
      %s47 = sshll.u32 [#allocation10], 4
      %s48 = int_to_ptr.vmem [resolvable:$true] %s47
      %50 = dma.hbm_to_vmem [thread:$0]  %s3, 128, %s48, [#allocation9]
    $region13: #{ctc_loss.3} parent=1 // pred_fallthru
      _
    // Predicated region
    $region14: #{ctc_loss.3} parent=1 // pred_check
      _
    $region15: #{ctc_loss.3} parent=1 // pred_check_branch
      %52 = sbr.rel (0) target = $region17
    $region16: #{ctc_loss.3} parent=1 // pred_region
      %s54 = ssub.s32 128, 128
      %55 = vsyncadd [#allocation12], %s54
      %s57 = sshll.u32 [#allocation11], 4
      %s58 = int_to_ptr.vmem [resolvable:$true] %s57
      %60 = dma.hbm_to_vmem [thread:$0]  %s4, 128, %s58, [#allocation12]
    $region17: #{ctc_loss.3} parent=1 // pred_fallthru
      _
    // Predicated region
    $region18: #{ctc_loss.3} parent=1 // pred_check
      _
    $region19: #{ctc_loss.3} parent=1 // pred_check_branch
      %62 = sbr.rel (0) target = $region21
    $region20: #{ctc_loss.3} parent=1 // pred_region
      %63 = dma.done [#allocation6], 1024
    $region21: #{ctc_loss.3} parent=1 // pred_fallthru
      _
    // Predicated region
    $region22: #{ctc_loss.3} parent=1 // pred_check
      _
    $region23: #{ctc_loss.3} parent=1 // pred_check_branch
      %65 = sbr.rel (0) target = $region25
    $region24: #{ctc_loss.3} parent=1 // pred_region
      %66 = dma.done [#allocation9], 128
    $region25: #{ctc_loss.3} parent=1 // pred_fallthru
      _
    // Predicated region
    $region26: #{ctc_loss.3} parent=1 // pred_check
      _
    $region27: #{ctc_loss.3} parent=1 // pred_check_branch
      %68 = sbr.rel (0) target = $region29
    $region28: #{ctc_loss.3} parent=1 // pred_region
      %69 = dma.done [#allocation9], 128
    $region29: #{ctc_loss.3} parent=1 // pred_fallthru
      _
    // Predicated region
    $region30: #{ctc_loss.3} parent=1 // pred_check
      _
    $region31: #{ctc_loss.3} parent=1 // pred_check_branch
      %71 = sbr.rel (0) target = $region33
    $region32: #{ctc_loss.3} parent=1 // pred_region
      %72 = dma.done [#allocation12], 128
    $region33: #{ctc_loss.3} parent=1 // pred_fallthru
      _
    %s73 = sadd.s32 0, 0
    %s74 = smul.u32 8, %s73
    %v75 = vlaneseq
    %v76 = vand.u32 %v75, 127
    %v77 = vld [vmem:[#allocation8] sm:$0xff]
    %v78 = vld [vmem:[#allocation11] sm:$0xff]
    %s79 = sld [smem:[#allocation4]]
    %s80 = smul.u32 0, 8
    %p81 = scmp.eq.s32.totalorder 0, 0
    // Predicated region
    $region34: #{ctc_loss.3} parent=1 // pred_check
      %p82 = pneg %p81
    $region35: #{ctc_loss.3} parent=1 // pred_check_branch
      %84 = sbr.rel (%p82) target = $region37
    $region36: #{ctc_loss.3} parent=1 // pred_region
      %vm85 = vcmp.lt.s32.totalorder %v76, 2
      %v86 = vld [vmem:[#allocation5] sm:$0xff]
      %v87 = vsel %vm85, %v86, -1e+30
      %88 = vst [vmem:[#allocation2] sm:$0xff] %v87
    $region37: #{ctc_loss.3} parent=1 // pred_fallthru
      _
    %s89 = scalar_select %p81, 1, 0
    %s90 = ssub.s32 %s79, %s80
    %p91 = scmp.gt.s32.totalorder %s90, 0
    %s92 = scalar_select %p91, %s90, 0
    %p93 = scmp.lt.s32.totalorder %s92, 8
    %s94 = scalar_select %p93, %s92, 8
    %v95 = vld [vmem:[#allocation2] sm:$0xff]
    // While loop
    $region38: #{ctc_loss.3} parent=1 // loop_pre_header
      _
    $region39: #{ctc_loss.3} parent=1 // loop_header
      %s97 = sphi %s89, %s99
      %p98 = scmp.ge.s32.totalorder %s97, %s94
      %v102 = vphi %v95, %v141
    $region40: #{ctc_loss.3} parent=1 // loop_header_branch
      %101 = sbr.rel (%p98) target = $region44
    $region41: #{ctc_loss.3} parent=1 // loop_body
      %s103 = smul.u32 %s97, 8
      %s104 = scalar_lea.vmem [#allocation5], %s103
      %v105 = vld [vmem:[%s104] sm:$0xff]
      %vm106 = vcmp.ge.s32.totalorder %v76, 1
      %107 = vrot.lane.b32.xlu0 %v102, 1
      %v108 = vpop.permute.xlu0 %107
      %v109 = vsel %vm106, %v108, -1e+30
      %vm110 = vcmp.ge.s32.totalorder %v76, 2
      %111 = vrot.lane.b32.xlu0 %v102, 2
      %v112 = vpop.permute.xlu0 %111
      %v113 = vsel %vm110, %v112, -1e+30
      %v114 = vadd.f32 %v113, %v77
      %v115 = vmax.f32 %v102, %v109
      %v116 = vmax.f32 %v115, %v114
      %v117 = vsub.f32 %v102, %v116
      %v118 = vmul.f32 %v117, 1.442695
      %v119 = vpow.pop %v118
      %v120 = vsub.f32 %v109, %v116
      %v121 = vmul.f32 %v120, 1.442695
      %v122 = vpow.pop %v121
      %v123 = vadd.f32 %v119, %v122
      %v124 = vsub.f32 %v114, %v116
      %v125 = vmul.f32 %v124, 1.442695
      %v126 = vpow.pop %v125
      %v127 = vadd.f32 %v123, %v126
      %v128 = vlog2.pop %v127
      %v129 = vmul.f32 %v128, 0.6931472
      %v130 = vadd.f32 %v116, %v129
      %v131 = vadd.f32 %v130, %v105
      %v132 = vmax.f32 %v131, -1e+30
      %s133 = sadd.s32 %s80, %s97
      %v134 = vstv %s133
      %vm135 = vcmp.lt.s32.totalorder %v134, %v78
      %v136 = vsel %vm135, 1, 0
      %137 = vset.pattern.permute.xlu0 0
      %138 = vperm.xlu0 %137, %v136
      %v139 = vpop.permute.xlu0 %138
      %vm140 = vcmp.eq.s32.totalorder %v139, 1
      %v141 = vsel %vm140, %v132, %v102
    $region42: #{ctc_loss.3} parent=1 // loop_footer
      %s99 = sadd.s32 %s97, 1
    $region43: #{ctc_loss.3} parent=1 // loop_footer_branch
      %96 = sbr.rel target = $region39
    $region44: #{ctc_loss.3} parent=1 // loop_exit
      _
    %142 = vst [vmem:[#allocation2] sm:$0xff] %v102
    // Predicated region
    $region45: #{ctc_loss.3} parent=1 // pred_check
      %p143 = pneg %p81
    $region46: #{ctc_loss.3} parent=1 // pred_check_branch
      %145 = sbr.rel (%p143) target = $region48
    $region47: #{ctc_loss.3} parent=1 // pred_region
      %v146 = vld [vmem:[#allocation2] sm:$0xff]
      %v147 = vld [vmem:[#allocation10] sm:$0xff]
      %v148 = vadd.f32 %v146, %v147
      %149 = vmax.xlane.f32.xlu0 %v148
      %v150 = vpop.xlane.xlu0 %149
      %v151 = vsub.f32 %v148, %v150
      %v152 = vmul.f32 %v151, 1.442695
      %v153 = vpow.pop %v152
      %154 = vadd.xlane.f32.xlu0 %v153
      %v155 = vpop.xlane.xlu0 %154
      %v156 = vlog2.pop %v155
      %v157 = vmul.f32 %v156, 0.6931472
      %v158 = vadd.f32 %v150, %v157
      %vm159 = vcmp.gt.f32.partialorder %v158, -5e+29
      %v160 = vsub.f32 0.0, %v158
      %v161 = vsel %vm159, %v160, 0.0
      %vm162 = vcmask 7168
      %163 = vst.msk [vmem:[#allocation13] sm:$0xff] %vm162, %v161
    $region48: #{ctc_loss.3} parent=1 // pred_fallthru
      _
    // Predicated region
    $region49: #{ctc_loss.3} parent=1 // pred_check
      _
    $region50: #{ctc_loss.3} parent=1 // pred_check_branch
      %165 = sbr.rel (0) target = $region52
    $region51: #{ctc_loss.3} parent=1 // pred_region
      %s167 = ssub.s32 128, 128
      %168 = vsyncadd [#allocation7], %s167
      %s170 = sshll.u32 [#allocation13], 4
      %s171 = int_to_ptr.vmem [resolvable:$true] %s170
      %173 = dma.vmem_to_hbm [thread:$0]  %s171, 128, %s5, [#allocation7]
    $region52: #{ctc_loss.3} parent=1 // pred_fallthru
      _
    // Predicated region
    $region53: #{ctc_loss.3} parent=1 // pred_check
      _
    $region54: #{ctc_loss.3} parent=1 // pred_check_branch
      %175 = sbr.rel (0) target = $region56
    $region55: #{ctc_loss.3} parent=1 // pred_region
      %176 = dma.done [#allocation7], 128
    $region56: #{ctc_loss.3} parent=1 // pred_fallthru
      _
    %177 = vsyncpa [#allocation6], 1
    %178 = vsyncpa [#allocation9], 1
    %179 = vsyncpa [#allocation12], 1
    %180 = vsyncpa [#allocation7], 1

// kernel: ctc_loss.2
$region0: #{ctc_loss.2}
  #allocation0 [shape = 'u32[]', space=smem, size = 0x4, offset = 0x4, fixed_abs, tag = 'smem constant byte address 0x4 - core index']
  #allocation1 [shape = 'u32[144,128]{1,0:T(1,128)}', space=vmem, size = 0x12000, scoped, tag = 'internal scratch']
  #allocation2 [shape = 'f32[64,1]{1,0:T(8,128)}', space=vmem, size = 0x8000, scoped, tag = 'scratch operand']
  #allocation3 [shape = 'f32[64,1]{1,0:T(8,128)}', space=vmem, size = 0x8000, scoped, tag = 'scratch operand']
  #allocation4 [shape = 'f32[8,8,128]{2,1,0:T(8,128)}', space=vmem, size = 0x8000, scoped, tag = 'scratch operand']
  %s0 = inlined_call_operand.hbm [shape: f32[8,8,32], index: 0, kind: input, shape index: {}]
  %s1 = inlined_call_operand.hbm [shape: f32[32,128], index: 1, kind: input, shape index: {}]
  %s2 = inlined_call_operand.hbm [shape: f32[1,128], index: 2, kind: input, shape index: {}]
  %s3 = inlined_call_operand.hbm [shape: f32[8,128,32], index: 3, kind: input, shape index: {}]
  %s4 = inlined_call_operand.hbm [shape: f32[8,128], index: 4, kind: input, shape index: {}]
  %s5 = inlined_call_operand.hbm [shape: f32[8,8,128], index: 5, kind: output, shape index: {}]
  %s6 = sld [smem:[#allocation0]]
  $region58: #{ctc_loss.2} parent=0
    _
  %s8 = ssub.s32 1, %s6
  %s9 = scalar_select 0, %s8, %s6
  $region1: #{ctc_loss.2} parent=0
    #allocation5 [shape = 'u8[32768]{0}', space=vmem, size = 0x8000, scoped, tag = 'input window, operand 0, single buffered']
    #allocation6 [shape = 's32[1]{0}', space=sflag, size = 0x4, scoped, tag = 'scoped memory for ctc_loss.2']
    #allocation7 [shape = 's32[1]{0}', space=sflag, size = 0x4, scoped, tag = 'scoped memory for ctc_loss.2']
    #allocation8 [shape = 'u8[16384]{0}', space=vmem, size = 0x4000, scoped, tag = 'input window, operand 1, single buffered']
    #allocation9 [shape = 's32[1]{0}', space=sflag, size = 0x4, scoped, tag = 'scoped memory for ctc_loss.2']
    #allocation10 [shape = 'u8[512]{0}', space=vmem, size = 0x400, scoped, tag = 'input window, operand 2, single buffered']
    #allocation11 [shape = 'u8[524288]{0}', space=vmem, size = 0x80000, scoped, tag = 'input window, operand 3, single buffered']
    #allocation12 [shape = 's32[1]{0}', space=sflag, size = 0x4, scoped, tag = 'scoped memory for ctc_loss.2']
    #allocation13 [shape = 'u8[4096]{0}', space=vmem, size = 0x1000, scoped, tag = 'input window, operand 4, single buffered']
    #allocation14 [shape = 'u8[32768]{0}', space=vmem, size = 0x8000, scoped, tag = 'output window, operand 0, single buffered']
    %10 = vsyncpa [#allocation6], 0
    %11 = vsyncpa [#allocation9], 0
    %12 = vsyncpa [#allocation12], 0
    %13 = vsyncpa [#allocation7], 0
    // Predicated region
    $region2: #{ctc_loss.2} parent=1 // pred_check
      _
    $region3: #{ctc_loss.2} parent=1 // pred_check_branch
      %15 = sbr.rel (0) target = $region5
    $region4: #{ctc_loss.2} parent=1 // pred_region
      %s17 = ssub.s32 1024, 1024
      %18 = vsyncadd [#allocation6], %s17
      %s19 = sshll.u32 [#allocation5], 4
      %s20 = int_to_ptr.vmem [resolvable:$true] %s19
      %25 = dma.hbm_to_vmem [thread:$0]  %s0, 1024, %s20, [#allocation6], 128, 128, 8
    $region5: #{ctc_loss.2} parent=1 // pred_fallthru
      _
    // Predicated region
    $region6: #{ctc_loss.2} parent=1 // pred_check
      _
    $region7: #{ctc_loss.2} parent=1 // pred_check_branch
      %27 = sbr.rel (0) target = $region9
    $region8: #{ctc_loss.2} parent=1 // pred_region
      %s29 = ssub.s32 512, 512
      %30 = vsyncadd [#allocation9], %s29
      %s31 = sshll.u32 [#allocation8], 4
      %s32 = int_to_ptr.vmem [resolvable:$true] %s31
      %37 = dma.hbm_to_vmem [thread:$0]  %s1, 512, %s32, [#allocation9], 128, 128, 8
    $region9: #{ctc_loss.2} parent=1 // pred_fallthru
      _
    // Predicated region
    $region10: #{ctc_loss.2} parent=1 // pred_check
      _
    $region11: #{ctc_loss.2} parent=1 // pred_check_branch
      %39 = sbr.rel (0) target = $region13
    $region12: #{ctc_loss.2} parent=1 // pred_region
      %s41 = ssub.s32 16, 16
      %42 = vsyncadd [#allocation9], %s41
      %s44 = sshll.u32 [#allocation10], 4
      %s45 = int_to_ptr.vmem [resolvable:$true] %s44
      %47 = dma.hbm_to_vmem [thread:$0]  %s2, 16, %s45, [#allocation9]
    $region13: #{ctc_loss.2} parent=1 // pred_fallthru
      _
    // Predicated region
    $region14: #{ctc_loss.2} parent=1 // pred_check
      _
    $region15: #{ctc_loss.2} parent=1 // pred_check_branch
      %49 = sbr.rel (0) target = $region17
    $region16: #{ctc_loss.2} parent=1 // pred_region
      %s51 = ssub.s32 16384, 16384
      %52 = vsyncadd [#allocation12], %s51
      %s53 = sshll.u32 [#allocation11], 4
      %s54 = int_to_ptr.vmem [resolvable:$true] %s53
      %59 = dma.hbm_to_vmem [thread:$0]  %s3, 16384, %s54, [#allocation12], 128, 128, 8
    $region17: #{ctc_loss.2} parent=1 // pred_fallthru
      _
    // Predicated region
    $region18: #{ctc_loss.2} parent=1 // pred_check
      _
    $region19: #{ctc_loss.2} parent=1 // pred_check_branch
      %61 = sbr.rel (0) target = $region21
    $region20: #{ctc_loss.2} parent=1 // pred_region
      %s63 = ssub.s32 128, 128
      %64 = vsyncadd [#allocation12], %s63
      %s66 = sshll.u32 [#allocation13], 4
      %s67 = int_to_ptr.vmem [resolvable:$true] %s66
      %69 = dma.hbm_to_vmem [thread:$0]  %s4, 128, %s67, [#allocation12]
    $region21: #{ctc_loss.2} parent=1 // pred_fallthru
      _
    // Predicated region
    $region22: #{ctc_loss.2} parent=1 // pred_check
      _
    $region23: #{ctc_loss.2} parent=1 // pred_check_branch
      %71 = sbr.rel (0) target = $region25
    $region24: #{ctc_loss.2} parent=1 // pred_region
      %72 = dma.done [#allocation6], 1024
    $region25: #{ctc_loss.2} parent=1 // pred_fallthru
      _
    // Predicated region
    $region26: #{ctc_loss.2} parent=1 // pred_check
      _
    $region27: #{ctc_loss.2} parent=1 // pred_check_branch
      %74 = sbr.rel (0) target = $region29
    $region28: #{ctc_loss.2} parent=1 // pred_region
      %75 = dma.done [#allocation9], 512
    $region29: #{ctc_loss.2} parent=1 // pred_fallthru
      _
    // Predicated region
    $region30: #{ctc_loss.2} parent=1 // pred_check
      _
    $region31: #{ctc_loss.2} parent=1 // pred_check_branch
      %77 = sbr.rel (0) target = $region33
    $region32: #{ctc_loss.2} parent=1 // pred_region
      %78 = dma.done [#allocation9], 16
    $region33: #{ctc_loss.2} parent=1 // pred_fallthru
      _
    // Predicated region
    $region34: #{ctc_loss.2} parent=1 // pred_check
      _
    $region35: #{ctc_loss.2} parent=1 // pred_check_branch
      %80 = sbr.rel (0) target = $region37
    $region36: #{ctc_loss.2} parent=1 // pred_region
      %81 = dma.done [#allocation12], 16384
    $region37: #{ctc_loss.2} parent=1 // pred_fallthru
      _
    // Predicated region
    $region38: #{ctc_loss.2} parent=1 // pred_check
      _
    $region39: #{ctc_loss.2} parent=1 // pred_check_branch
      %83 = sbr.rel (0) target = $region41
    $region40: #{ctc_loss.2} parent=1 // pred_region
      %84 = dma.done [#allocation12], 128
    $region41: #{ctc_loss.2} parent=1 // pred_fallthru
      _
    %s85 = sadd.s32 0, 0
    %s86 = smul.u32 8, %s85
    %p87 = scmp.eq.s32.totalorder 0, 0
    // Predicated region
    $region42: #{ctc_loss.2} parent=1 // pred_check
      %p88 = pneg %p87
    $region43: #{ctc_loss.2} parent=1 // pred_check_branch
      %90 = sbr.rel (%p88) target = $region45
    $region44: #{ctc_loss.2} parent=1 // pred_region
      %vm91 = vcmask 7168
      %92 = vst.msk [vmem:[#allocation2] sm:$0xff] %vm91, -1e+30
      %93 = vst.msk [vmem:[#allocation2 + $0x8] sm:$0xff] %vm91, -1e+30
      %94 = vst.msk [vmem:[#allocation2 + $0x10] sm:$0xff] %vm91, -1e+30
      %95 = vst.msk [vmem:[#allocation2 + $0x18] sm:$0xff] %vm91, -1e+30
      %96 = vst.msk [vmem:[#allocation2 + $0x20] sm:$0xff] %vm91, -1e+30
      %97 = vst.msk [vmem:[#allocation2 + $0x28] sm:$0xff] %vm91, -1e+30
      %98 = vst.msk [vmem:[#allocation2 + $0x30] sm:$0xff] %vm91, -1e+30
      %99 = vst.msk [vmem:[#allocation2 + $0x38] sm:$0xff] %vm91, -1e+30
      %100 = vst.msk [vmem:[#allocation3] sm:$0xff] %vm91, 0.0
      %101 = vst.msk [vmem:[#allocation3 + $0x8] sm:$0xff] %vm91, 0.0
      %102 = vst.msk [vmem:[#allocation3 + $0x10] sm:$0xff] %vm91, 0.0
      %103 = vst.msk [vmem:[#allocation3 + $0x18] sm:$0xff] %vm91, 0.0
      %104 = vst.msk [vmem:[#allocation3 + $0x20] sm:$0xff] %vm91, 0.0
      %105 = vst.msk [vmem:[#allocation3 + $0x28] sm:$0xff] %vm91, 0.0
      %106 = vst.msk [vmem:[#allocation3 + $0x30] sm:$0xff] %vm91, 0.0
      %107 = vst.msk [vmem:[#allocation3 + $0x38] sm:$0xff] %vm91, 0.0
      %v108 = vld [vmem:[#allocation5] sm:$0xff]
      %v109 = vld [vmem:[#allocation5 + $0x8] sm:$0xff]
      %v110 = vld [vmem:[#allocation5 + $0x10] sm:$0xff]
      %v111 = vld [vmem:[#allocation5 + $0x18] sm:$0xff]
      %v112 = vld [vmem:[#allocation5 + $0x20] sm:$0xff]
      %v113 = vld [vmem:[#allocation5 + $0x28] sm:$0xff]
      %v114 = vld [vmem:[#allocation5 + $0x30] sm:$0xff]
      %v115 = vld [vmem:[#allocation5 + $0x38] sm:$0xff]
      %v116 = vld [vmem:[#allocation11] sm:$0xff]
      %v117 = vld [vmem:[#allocation11 + $0x8] sm:$0xff]
      %v118 = vld [vmem:[#allocation11 + $0x10] sm:$0xff]
      %v119 = vld [vmem:[#allocation11 + $0x18] sm:$0xff]
      %v120 = vld [vmem:[#allocation11 + $0x20] sm:$0xff]
      %v121 = vld [vmem:[#allocation11 + $0x28] sm:$0xff]
      %v122 = vld [vmem:[#allocation11 + $0x30] sm:$0xff]
      %v123 = vld [vmem:[#allocation11 + $0x38] sm:$0xff]
      %v124 = vld [vmem:[#allocation11 + $0x40] sm:$0xff]
      %v125 = vld [vmem:[#allocation11 + $0x48] sm:$0xff]
      %v126 = vld [vmem:[#allocation11 + $0x50] sm:$0xff]
      %v127 = vld [vmem:[#allocation11 + $0x58] sm:$0xff]
      %v128 = vld [vmem:[#allocation11 + $0x60] sm:$0xff]
      %v129 = vld [vmem:[#allocation11 + $0x68] sm:$0xff]
      %v130 = vld [vmem:[#allocation11 + $0x70] sm:$0xff]
      %v131 = vld [vmem:[#allocation11 + $0x78] sm:$0xff]
      %v132 = vld [vmem:[#allocation11 + $0x80] sm:$0xff]
      %v133 = vld [vmem:[#allocation11 + $0x88] sm:$0xff]
      %v134 = vld [vmem:[#allocation11 + $0x90] sm:$0xff]
      %v135 = vld [vmem:[#allocation11 + $0x98] sm:$0xff]
      %v136 = vld [vmem:[#allocation11 + $0xa0] sm:$0xff]
      %v137 = vld [vmem:[#allocation11 + $0xa8] sm:$0xff]
      %v138 = vld [vmem:[#allocation11 + $0xb0] sm:$0xff]
      %v139 = vld [vmem:[#allocation11 + $0xb8] sm:$0xff]
      %v140 = vld [vmem:[#allocation11 + $0xc0] sm:$0xff]
      %v141 = vld [vmem:[#allocation11 + $0xc8] sm:$0xff]
      %v142 = vld [vmem:[#allocation11 + $0xd0] sm:$0xff]
      %v143 = vld [vmem:[#allocation11 + $0xd8] sm:$0xff]
      %v144 = vld [vmem:[#allocation11 + $0xe0] sm:$0xff]
      %v145 = vld [vmem:[#allocation11 + $0xe8] sm:$0xff]
      %v146 = vld [vmem:[#allocation11 + $0xf0] sm:$0xff]
      %v147 = vld [vmem:[#allocation11 + $0xf8] sm:$0xff]
      %v148 = vld [vmem:[#allocation11 + $0x100] sm:$0xff]
      %v149 = vld [vmem:[#allocation11 + $0x108] sm:$0xff]
      %v150 = vld [vmem:[#allocation11 + $0x110] sm:$0xff]
      %v151 = vld [vmem:[#allocation11 + $0x118] sm:$0xff]
      %v152 = vld [vmem:[#allocation11 + $0x120] sm:$0xff]
      %v153 = vld [vmem:[#allocation11 + $0x128] sm:$0xff]
      %v154 = vld [vmem:[#allocation11 + $0x130] sm:$0xff]
      %v155 = vld [vmem:[#allocation11 + $0x138] sm:$0xff]
      %v156 = vld [vmem:[#allocation11 + $0x140] sm:$0xff]
      %v157 = vld [vmem:[#allocation11 + $0x148] sm:$0xff]
      %v158 = vld [vmem:[#allocation11 + $0x150] sm:$0xff]
      %v159 = vld [vmem:[#allocation11 + $0x158] sm:$0xff]
      %v160 = vld [vmem:[#allocation11 + $0x160] sm:$0xff]
      %v161 = vld [vmem:[#allocation11 + $0x168] sm:$0xff]
      %v162 = vld [vmem:[#allocation11 + $0x170] sm:$0xff]
      %v163 = vld [vmem:[#allocation11 + $0x178] sm:$0xff]
      %v164 = vld [vmem:[#allocation11 + $0x180] sm:$0xff]
      %v165 = vld [vmem:[#allocation11 + $0x188] sm:$0xff]
      %v166 = vld [vmem:[#allocation11 + $0x190] sm:$0xff]
      %v167 = vld [vmem:[#allocation11 + $0x198] sm:$0xff]
      %v168 = vld [vmem:[#allocation11 + $0x1a0] sm:$0xff]
      %v169 = vld [vmem:[#allocation11 + $0x1a8] sm:$0xff]
      %v170 = vld [vmem:[#allocation11 + $0x1b0] sm:$0xff]
      %v171 = vld [vmem:[#allocation11 + $0x1b8] sm:$0xff]
      %v172 = vld [vmem:[#allocation11 + $0x1c0] sm:$0xff]
      %v173 = vld [vmem:[#allocation11 + $0x1c8] sm:$0xff]
      %v174 = vld [vmem:[#allocation11 + $0x1d0] sm:$0xff]
      %v175 = vld [vmem:[#allocation11 + $0x1d8] sm:$0xff]
      %v176 = vld [vmem:[#allocation11 + $0x1e0] sm:$0xff]
      %v177 = vld [vmem:[#allocation11 + $0x1e8] sm:$0xff]
      %v178 = vld [vmem:[#allocation11 + $0x1f0] sm:$0xff]
      %v179 = vld [vmem:[#allocation11 + $0x1f8] sm:$0xff]
      %v180 = vld [vmem:[#allocation11 + $0x200] sm:$0xff]
      %v181 = vld [vmem:[#allocation11 + $0x208] sm:$0xff]
      %v182 = vld [vmem:[#allocation11 + $0x210] sm:$0xff]
      %v183 = vld [vmem:[#allocation11 + $0x218] sm:$0xff]
      %v184 = vld [vmem:[#allocation11 + $0x220] sm:$0xff]
      %v185 = vld [vmem:[#allocation11 + $0x228] sm:$0xff]
      %v186 = vld [vmem:[#allocation11 + $0x230] sm:$0xff]
      %v187 = vld [vmem:[#allocation11 + $0x238] sm:$0xff]
      %v188 = vld [vmem:[#allocation11 + $0x240] sm:$0xff]
      %v189 = vld [vmem:[#allocation11 + $0x248] sm:$0xff]
      %v190 = vld [vmem:[#allocation11 + $0x250] sm:$0xff]
      %v191 = vld [vmem:[#allocation11 + $0x258] sm:$0xff]
      %v192 = vld [vmem:[#allocation11 + $0x260] sm:$0xff]
      %v193 = vld [vmem:[#allocation11 + $0x268] sm:$0xff]
      %v194 = vld [vmem:[#allocation11 + $0x270] sm:$0xff]
      %v195 = vld [vmem:[#allocation11 + $0x278] sm:$0xff]
      %v196 = vld [vmem:[#allocation11 + $0x280] sm:$0xff]
      %v197 = vld [vmem:[#allocation11 + $0x288] sm:$0xff]
      %v198 = vld [vmem:[#allocation11 + $0x290] sm:$0xff]
      %v199 = vld [vmem:[#allocation11 + $0x298] sm:$0xff]
      %v200 = vld [vmem:[#allocation11 + $0x2a0] sm:$0xff]
      %v201 = vld [vmem:[#allocation11 + $0x2a8] sm:$0xff]
      %v202 = vld [vmem:[#allocation11 + $0x2b0] sm:$0xff]
      %v203 = vld [vmem:[#allocation11 + $0x2b8] sm:$0xff]
      %v204 = vld [vmem:[#allocation11 + $0x2c0] sm:$0xff]
      %v205 = vld [vmem:[#allocation11 + $0x2c8] sm:$0xff]
      %v206 = vld [vmem:[#allocation11 + $0x2d0] sm:$0xff]
      %v207 = vld [vmem:[#allocation11 + $0x2d8] sm:$0xff]
      %v208 = vld [vmem:[#allocation11 + $0x2e0] sm:$0xff]
      %v209 = vld [vmem:[#allocation11 + $0x2e8] sm:$0xff]
      %v210 = vld [vmem:[#allocation11 + $0x2f0] sm:$0xff]
      %v211 = vld [vmem:[#allocation11 + $0x2f8] sm:$0xff]
      %v212 = vld [vmem:[#allocation11 + $0x300] sm:$0xff]
      %v213 = vld [vmem:[#allocation11 + $0x308] sm:$0xff]
      %v214 = vld [vmem:[#allocation11 + $0x310] sm:$0xff]
      %v215 = vld [vmem:[#allocation11 + $0x318] sm:$0xff]
      %v216 = vld [vmem:[#allocation11 + $0x320] sm:$0xff]
      %v217 = vld [vmem:[#allocation11 + $0x328] sm:$0xff]
      %v218 = vld [vmem:[#allocation11 + $0x330] sm:$0xff]
      %v219 = vld [vmem:[#allocation11 + $0x338] sm:$0xff]
      %v220 = vld [vmem:[#allocation11 + $0x340] sm:$0xff]
      %v221 = vld [vmem:[#allocation11 + $0x348] sm:$0xff]
      %v222 = vld [vmem:[#allocation11 + $0x350] sm:$0xff]
      %v223 = vld [vmem:[#allocation11 + $0x358] sm:$0xff]
      %v224 = vld [vmem:[#allocation11 + $0x360] sm:$0xff]
      %v225 = vld [vmem:[#allocation11 + $0x368] sm:$0xff]
      %v226 = vld [vmem:[#allocation11 + $0x370] sm:$0xff]
      %v227 = vld [vmem:[#allocation11 + $0x378] sm:$0xff]
      %v228 = vld [vmem:[#allocation11 + $0x380] sm:$0xff]
      %v229 = vld [vmem:[#allocation11 + $0x388] sm:$0xff]
      %v230 = vld [vmem:[#allocation11 + $0x390] sm:$0xff]
      %v231 = vld [vmem:[#allocation11 + $0x398] sm:$0xff]
      %v232 = vld [vmem:[#allocation11 + $0x3a0] sm:$0xff]
      %v233 = vld [vmem:[#allocation11 + $0x3a8] sm:$0xff]
      %v234 = vld [vmem:[#allocation11 + $0x3b0] sm:$0xff]
      %v235 = vld [vmem:[#allocation11 + $0x3b8] sm:$0xff]
      %v236 = vld [vmem:[#allocation11 + $0x3c0] sm:$0xff]
      %v237 = vld [vmem:[#allocation11 + $0x3c8] sm:$0xff]
      %v238 = vld [vmem:[#allocation11 + $0x3d0] sm:$0xff]
      %v239 = vld [vmem:[#allocation11 + $0x3d8] sm:$0xff]
      %v240 = vld [vmem:[#allocation11 + $0x3e0] sm:$0xff]
      %v241 = vld [vmem:[#allocation11 + $0x3e8] sm:$0xff]
      %v242 = vld [vmem:[#allocation11 + $0x3f0] sm:$0xff]
      %v243 = vld [vmem:[#allocation11 + $0x3f8] sm:$0xff]
      %v244 = vld [vmem:[#allocation13] sm:$0xff]
      %v246 = vcombine.high %v244, %v244
      %v248 = vunpack.c.l.s4 1966171168
      %v249 = vunpack.c.0.s8 %v248
      %v250 = vlaneseq
      %v251 = vshrl.u32 %v250, 7
      %v252 = vsub.s32 %v249, %v251
      %v253 = vrot.slane %v244, %v252
      %v255 = vunpack.c.l.s4 1966171168
      %v256 = vunpack.c.0.s8 %v255
      %v257 = vlaneseq
      %v258 = vshrl.u32 %v257, 7
      %v259 = vsub.s32 %v256, %v258
      %v260 = vrot.slane %v246, %v259
      %v261 = vcombine.high %v253, %v253
      %v262 = vcombine.high %v260, %v260
      %v264 = vunpack.c.l.s4 1966171168
      %v265 = vunpack.c.0.s8 %v264
      %v266 = vlaneseq
      %v267 = vshrl.u32 %v266, 7
      %v268 = vsub.s32 %v265, %v267
      %v269 = vrot.slane %v253, %v268
      %v271 = vunpack.c.l.s4 1966171168
      %v272 = vunpack.c.0.s8 %v271
      %v273 = vlaneseq
      %v274 = vshrl.u32 %v273, 7
      %v275 = vsub.s32 %v272, %v274
      %v276 = vrot.slane %v260, %v275
      %v278 = vunpack.c.l.s4 1966171168
      %v279 = vunpack.c.0.s8 %v278
      %v280 = vlaneseq
      %v281 = vshrl.u32 %v280, 7
      %v282 = vsub.s32 %v279, %v281
      %v283 = vrot.slane %v261, %v282
      %v285 = vunpack.c.l.s4 1966171168
      %v286 = vunpack.c.0.s8 %v285
      %v287 = vlaneseq
      %v288 = vshrl.u32 %v287, 7
      %v289 = vsub.s32 %v286, %v288
      %v290 = vrot.slane %v262, %v289
      %v291 = vcombine.high %v269, %v269
      %v292 = vcombine.high %v276, %v276
      %v293 = vcombine.high %v283, %v283
      %v294 = vcombine.high %v290, %v290
      %v295 = vlaneseq
      %v296 = vshrl.u32 %v295, 7
      %v297 = vsub.s32 0, %v296
      %v298 = vrot.slane %v269, %v297
      %v299 = vlaneseq
      %v300 = vshrl.u32 %v299, 7
      %v301 = vsub.s32 0, %v300
      %v302 = vrot.slane %v283, %v301
      %v303 = vlaneseq
      %v304 = vshrl.u32 %v303, 7
      %v305 = vsub.s32 0, %v304
      %v306 = vrot.slane %v291, %v305
      %v307 = vlaneseq
      %v308 = vshrl.u32 %v307, 7
      %v309 = vsub.s32 0, %v308
      %v310 = vrot.slane %v293, %v309
      %v311 = vlaneseq
      %v312 = vshrl.u32 %v311, 7
      %v313 = vsub.s32 0, %v312
      %v314 = vrot.slane %v276, %v313
      %v315 = vlaneseq
      %v316 = vshrl.u32 %v315, 7
      %v317 = vsub.s32 0, %v316
      %v318 = vrot.slane %v290, %v317
      %v319 = vlaneseq
      %v320 = vshrl.u32 %v319, 7
      %v321 = vsub.s32 0, %v320
      %v322 = vrot.slane %v292, %v321
      %v323 = vlaneseq
      %v324 = vshrl.u32 %v323, 7
      %v325 = vsub.s32 0, %v324
      %v326 = vrot.slane %v294, %v325
      %vm335 = vcmask 261120
      %v337 = vsel %vm335, %v108, 0
      %v340 = vsel %vm335, %v116, 0
      %v343 = vsel %vm335, %v117, 0
      %v346 = vsel %vm335, %v118, 0
      %v349 = vsel %vm335, %v119, 0
      %v352 = vsel %vm335, %v120, 0
      %v355 = vsel %vm335, %v121, 0
      %v358 = vsel %vm335, %v122, 0
      %v361 = vsel %vm335, %v123, 0
      %v364 = vsel %vm335, %v124, 0
      %v367 = vsel %vm335, %v125, 0
      %v370 = vsel %vm335, %v126, 0
      %v373 = vsel %vm335, %v127, 0
      %v376 = vsel %vm335, %v128, 0
      %v379 = vsel %vm335, %v129, 0
      %v382 = vsel %vm335, %v130, 0
      %v385 = vsel %vm335, %v131, 0
      %387 = vmatprep.subr.mxu0 0.0
      %388 = vmatpush1.xpose.msra.mxu0 %v340
      %389 = vmatprep.subr.mxu0 0.0
      %390 = vmatpush1.xpose.msra.mxu0 %v343
      %391 = vmatprep.subr.mxu0 0.0
      %392 = vmatpush1.xpose.msra.mxu0 %v346
      %393 = vmatprep.subr.mxu0 0.0
      %394 = vmatpush1.xpose.msra.mxu0 %v349
      %395 = vmatprep.subr.mxu0 0.0
      %396 = vmatpush1.xpose.msra.mxu0 %v352
      %397 = vmatprep.subr.mxu0 0.0
      %398 = vmatpush1.xpose.msra.mxu0 %v355
      %399 = vmatprep.subr.mxu0 0.0
      %400 = vmatpush1.xpose.msra.mxu0 %v358
      %401 = vmatprep.subr.mxu0 0.0
      %402 = vmatpush1.xpose.msra.mxu0 %v361
      %403 = vmatprep.subr.mxu0 0.0
      %404 = vmatpush1.xpose.msra.mxu0 %v364
      %405 = vmatprep.subr.mxu0 0.0
      %406 = vmatpush1.xpose.msra.mxu0 %v367
      %407 = vmatprep.subr.mxu0 0.0
      %408 = vmatpush1.xpose.msra.mxu0 %v370
      %409 = vmatprep.subr.mxu0 0.0
      %410 = vmatpush1.xpose.msra.mxu0 %v373
      %411 = vmatprep.subr.mxu0 0.0
      %412 = vmatpush1.xpose.msra.mxu0 %v376
      %413 = vmatprep.subr.mxu0 0.0
      %414 = vmatpush1.xpose.msra.mxu0 %v379
      %415 = vmatprep.subr.mxu0 0.0
      %416 = vmatpush1.xpose.msra.mxu0 %v382
      %417 = vmatprep.subr.mxu0 0.0
      %418 = vmatpush1.xpose.msra.mxu0 %v385
      %419 = vmatprep.subr.mxu0 0.0
      %420 = vmatpush1.xpose.msra.mxu0 0.0
      %421 = vmatprep.subr.mxu0 0.0
      %422 = vmatpush1.xpose.msra.mxu0 0.0
      %423 = vmatprep.subr.mxu0 0.0
      %424 = vmatpush1.xpose.msra.mxu0 0.0
      %425 = vmatprep.subr.mxu0 0.0
      %426 = vmatpush1.xpose.msra.mxu0 0.0
      %427 = vmatprep.subr.mxu0 0.0
      %428 = vmatpush1.xpose.msra.mxu0 0.0
      %429 = vmatprep.subr.mxu0 0.0
      %430 = vmatpush1.xpose.msra.mxu0 0.0
      %431 = vmatprep.subr.mxu0 0.0
      %432 = vmatpush1.xpose.msra.mxu0 0.0
      %433 = vmatprep.subr.mxu0 0.0
      %434 = vmatpush1.xpose.msra.mxu0 0.0
      %435 = vmatprep.subr.mxu0 0.0
      %436 = vmatpush1.xpose.msra.mxu0 0.0
      %437 = vmatprep.subr.mxu0 0.0
      %438 = vmatpush1.xpose.msra.mxu0 0.0
      %439 = vmatprep.subr.mxu0 0.0
      %440 = vmatpush1.xpose.msra.mxu0 0.0
      %441 = vmatprep.subr.mxu0 0.0
      %442 = vmatpush1.xpose.msra.mxu0 0.0
      %443 = vmatprep.subr.mxu0 0.0
      %444 = vmatpush1.xpose.msra.mxu0 0.0
      %445 = vmatprep.subr.mxu0 0.0
      %446 = vmatpush1.xpose.msra.mxu0 0.0
      %447 = vmatprep.subr.mxu0 0.0
      %448 = vmatpush1.xpose.msra.mxu0 0.0
      %449 = vmatprep.subr.mxu0 0.0
      %450 = vmatpush1.xpose.msra.mxu0 0.0
      %451 = vmatprep.mubr.f32.mxu0 0.0
      %452 = vmatmul.mubr.f32.gmra.mrb[0].mxu0 %v337
      %v453 = vpop.f32.mrb[0].mxu0
      %v454 = vadd.f32 %v298, %v453
      %v455 = vpop.f32.mrb[0].mxu0
      %456 = vdwg.mxu0
      %v458 = vsel %vm335, %v109, 0
      %v461 = vsel %vm335, %v132, 0
      %v464 = vsel %vm335, %v133, 0
      %v467 = vsel %vm335, %v134, 0
      %v470 = vsel %vm335, %v135, 0
      %v473 = vsel %vm335, %v136, 0
      %v476 = vsel %vm335, %v137, 0
      %v479 = vsel %vm335, %v138, 0
      %v482 = vsel %vm335, %v139, 0
      %v485 = vsel %vm335, %v140, 0
      %v488 = vsel %vm335, %v141, 0
      %v491 = vsel %vm335, %v142, 0
      %v494 = vsel %vm335, %v143, 0
      %v497 = vsel %vm335, %v144, 0
      %v500 = vsel %vm335, %v145, 0
      %v503 = vsel %vm335, %v146, 0
      %v506 = vsel %vm335, %v147, 0
      %508 = vmatprep.subr.mxu0 0.0
      %509 = vmatpush1.xpose.msra.mxu0 %v461
      %510 = vmatprep.subr.mxu0 0.0
      %511 = vmatpush1.xpose.msra.mxu0 %v464
      %512 = vmatprep.subr.mxu0 0.0
      %513 = vmatpush1.xpose.msra.mxu0 %v467
      %514 = vmatprep.subr.mxu0 0.0
      %515 = vmatpush1.xpose.msra.mxu0 %v470
      %516 = vmatprep.subr.mxu0 0.0
      %517 = vmatpush1.xpose.msra.mxu0 %v473
      %518 = vmatprep.subr.mxu0 0.0
      %519 = vmatpush1.xpose.msra.mxu0 %v476
      %520 = vmatprep.subr.mxu0 0.0
      %521 = vmatpush1.xpose.msra.mxu0 %v479
      %522 = vmatprep.subr.mxu0 0.0
      %523 = vmatpush1.xpose.msra.mxu0 %v482
      %524 = vmatprep.subr.mxu0 0.0
      %525 = vmatpush1.xpose.msra.mxu0 %v485
      %526 = vmatprep.subr.mxu0 0.0
      %527 = vmatpush1.xpose.msra.mxu0 %v488
      %528 = vmatprep.subr.mxu0 0.0
      %529 = vmatpush1.xpose.msra.mxu0 %v491
      %530 = vmatprep.subr.mxu0 0.0
      %531 = vmatpush1.xpose.msra.mxu0 %v494
      %532 = vmatprep.subr.mxu0 0.0
      %533 = vmatpush1.xpose.msra.mxu0 %v497
      %534 = vmatprep.subr.mxu0 0.0
      %535 = vmatpush1.xpose.msra.mxu0 %v500
      %536 = vmatprep.subr.mxu0 0.0
      %537 = vmatpush1.xpose.msra.mxu0 %v503
      %538 = vmatprep.subr.mxu0 0.0
      %539 = vmatpush1.xpose.msra.mxu0 %v506
      %540 = vmatprep.subr.mxu0 0.0
      %541 = vmatpush1.xpose.msra.mxu0 0.0
      %542 = vmatprep.subr.mxu0 0.0
      %543 = vmatpush1.xpose.msra.mxu0 0.0
      %544 = vmatprep.subr.mxu0 0.0
      %545 = vmatpush1.xpose.msra.mxu0 0.0
      %546 = vmatprep.subr.mxu0 0.0
      %547 = vmatpush1.xpose.msra.mxu0 0.0
      %548 = vmatprep.subr.mxu0 0.0
      %549 = vmatpush1.xpose.msra.mxu0 0.0
      %550 = vmatprep.subr.mxu0 0.0
      %551 = vmatpush1.xpose.msra.mxu0 0.0
      %552 = vmatprep.subr.mxu0 0.0
      %553 = vmatpush1.xpose.msra.mxu0 0.0
      %554 = vmatprep.subr.mxu0 0.0
      %555 = vmatpush1.xpose.msra.mxu0 0.0
      %556 = vmatprep.subr.mxu0 0.0
      %557 = vmatpush1.xpose.msra.mxu0 0.0
      %558 = vmatprep.subr.mxu0 0.0
      %559 = vmatpush1.xpose.msra.mxu0 0.0
      %560 = vmatprep.subr.mxu0 0.0
      %561 = vmatpush1.xpose.msra.mxu0 0.0
      %562 = vmatprep.subr.mxu0 0.0
      %563 = vmatpush1.xpose.msra.mxu0 0.0
      %564 = vmatprep.subr.mxu0 0.0
      %565 = vmatpush1.xpose.msra.mxu0 0.0
      %566 = vmatprep.subr.mxu0 0.0
      %567 = vmatpush1.xpose.msra.mxu0 0.0
      %568 = vmatprep.subr.mxu0 0.0
      %569 = vmatpush1.xpose.msra.mxu0 0.0
      %570 = vmatprep.subr.mxu0 0.0
      %571 = vmatpush1.xpose.msra.mxu0 0.0
      %572 = vmatprep.mubr.f32.mxu0 0.0
      %573 = vmatmul.mubr.f32.gmra.mrb[0].mxu0 %v458
      %v574 = vpop.f32.mrb[0].mxu0
      %v575 = vadd.f32 %v302, %v574
      %v576 = vpop.f32.mrb[0].mxu0
      %577 = vdwg.mxu0
      %v579 = vsel %vm335, %v110, 0
      %v582 = vsel %vm335, %v148, 0
      %v585 = vsel %vm335, %v149, 0
      %v588 = vsel %vm335, %v150, 0
      %v591 = vsel %vm335, %v151, 0
      %v594 = vsel %vm335, %v152, 0
      %v597 = vsel %vm335, %v153, 0
      %v600 = vsel %vm335, %v154, 0
      %v603 = vsel %vm335, %v155, 0
      %v606 = vsel %vm335, %v156, 0
      %v609 = vsel %vm335, %v157, 0
      %v612 = vsel %vm335, %v158, 0
      %v615 = vsel %vm335, %v159, 0
      %v618 = vsel %vm335, %v160, 0
      %v621 = vsel %vm335, %v161, 0
      %v624 = vsel %vm335, %v162, 0
      %v627 = vsel %vm335, %v163, 0
      %629 = vmatprep.subr.mxu0 0.0
      %630 = vmatpush1.xpose.msra.mxu0 %v582
      %631 = vmatprep.subr.mxu0 0.0
      %632 = vmatpush1.xpose.msra.mxu0 %v585
      %633 = vmatprep.subr.mxu0 0.0
      %634 = vmatpush1.xpose.msra.mxu0 %v588
      %635 = vmatprep.subr.mxu0 0.0
      %636 = vmatpush1.xpose.msra.mxu0 %v591
      %637 = vmatprep.subr.mxu0 0.0
      %638 = vmatpush1.xpose.msra.mxu0 %v594
      %639 = vmatprep.subr.mxu0 0.0
      %640 = vmatpush1.xpose.msra.mxu0 %v597
      %641 = vmatprep.subr.mxu0 0.0
      %642 = vmatpush1.xpose.msra.mxu0 %v600
      %643 = vmatprep.subr.mxu0 0.0
      %644 = vmatpush1.xpose.msra.mxu0 %v603
      %645 = vmatprep.subr.mxu0 0.0
      %646 = vmatpush1.xpose.msra.mxu0 %v606
      %647 = vmatprep.subr.mxu0 0.0
      %648 = vmatpush1.xpose.msra.mxu0 %v609
      %649 = vmatprep.subr.mxu0 0.0
      %650 = vmatpush1.xpose.msra.mxu0 %v612
      %651 = vmatprep.subr.mxu0 0.0
      %652 = vmatpush1.xpose.msra.mxu0 %v615
      %653 = vmatprep.subr.mxu0 0.0
      %654 = vmatpush1.xpose.msra.mxu0 %v618
      %655 = vmatprep.subr.mxu0 0.0
      %656 = vmatpush1.xpose.msra.mxu0 %v621
      %657 = vmatprep.subr.mxu0 0.0
      %658 = vmatpush1.xpose.msra.mxu0 %v624
      %659 = vmatprep.subr.mxu0 0.0
      %660 = vmatpush1.xpose.msra.mxu0 %v627
      %661 = vmatprep.subr.mxu0 0.0
      %662 = vmatpush1.xpose.msra.mxu0 0.0
      %663 = vmatprep.subr.mxu0 0.0
      %664 = vmatpush1.xpose.msra.mxu0 0.0
      %665 = vmatprep.subr.mxu0 0.0
      %666 = vmatpush1.xpose.msra.mxu0 0.0
      %667 = vmatprep.subr.mxu0 0.0
      %668 = vmatpush1.xpose.msra.mxu0 0.0
      %669 = vmatprep.subr.mxu0 0.0
      %670 = vmatpush1.xpose.msra.mxu0 0.0
      %671 = vmatprep.subr.mxu0 0.0
      %672 = vmatpush1.xpose.msra.mxu0 0.0
      %673 = vmatprep.subr.mxu0 0.0
      %674 = vmatpush1.xpose.msra.mxu0 0.0
      %675 = vmatprep.subr.mxu0 0.0
      %676 = vmatpush1.xpose.msra.mxu0 0.0
      %677 = vmatprep.subr.mxu0 0.0
      %678 = vmatpush1.xpose.msra.mxu0 0.0
      %679 = vmatprep.subr.mxu0 0.0
      %680 = vmatpush1.xpose.msra.mxu0 0.0
      %681 = vmatprep.subr.mxu0 0.0
      %682 = vmatpush1.xpose.msra.mxu0 0.0
      %683 = vmatprep.subr.mxu0 0.0
      %684 = vmatpush1.xpose.msra.mxu0 0.0
      %685 = vmatprep.subr.mxu0 0.0
      %686 = vmatpush1.xpose.msra.mxu0 0.0
      %687 = vmatprep.subr.mxu0 0.0
      %688 = vmatpush1.xpose.msra.mxu0 0.0
      %689 = vmatprep.subr.mxu0 0.0
      %690 = vmatpush1.xpose.msra.mxu0 0.0
      %691 = vmatprep.subr.mxu0 0.0
      %692 = vmatpush1.xpose.msra.mxu0 0.0
      %693 = vmatprep.mubr.f32.mxu0 0.0
      %694 = vmatmul.mubr.f32.gmra.mrb[0].mxu0 %v579
      %v695 = vpop.f32.mrb[0].mxu0
      %v696 = vadd.f32 %v306, %v695
      %v697 = vpop.f32.mrb[0].mxu0
      %698 = vdwg.mxu0
      %v700 = vsel %vm335, %v111, 0
      %v703 = vsel %vm335, %v164, 0
      %v706 = vsel %vm335, %v165, 0
      %v709 = vsel %vm335, %v166, 0
      %v712 = vsel %vm335, %v167, 0
      %v715 = vsel %vm335, %v168, 0
      %v718 = vsel %vm335, %v169, 0
      %v721 = vsel %vm335, %v170, 0
      %v724 = vsel %vm335, %v171, 0
      %v727 = vsel %vm335, %v172, 0
      %v730 = vsel %vm335, %v173, 0
      %v733 = vsel %vm335, %v174, 0
      %v736 = vsel %vm335, %v175, 0
      %v739 = vsel %vm335, %v176, 0
      %v742 = vsel %vm335, %v177, 0
      %v745 = vsel %vm335, %v178, 0
      %v748 = vsel %vm335, %v179, 0
      %750 = vmatprep.subr.mxu0 0.0
      %751 = vmatpush1.xpose.msra.mxu0 %v703
      %752 = vmatprep.subr.mxu0 0.0
      %753 = vmatpush1.xpose.msra.mxu0 %v706
      %754 = vmatprep.subr.mxu0 0.0
      %755 = vmatpush1.xpose.msra.mxu0 %v709
      %756 = vmatprep.subr.mxu0 0.0
      %757 = vmatpush1.xpose.msra.mxu0 %v712
      %758 = vmatprep.subr.mxu0 0.0
      %759 = vmatpush1.xpose.msra.mxu0 %v715
      %760 = vmatprep.subr.mxu0 0.0
      %761 = vmatpush1.xpose.msra.mxu0 %v718
      %762 = vmatprep.subr.mxu0 0.0
      %763 = vmatpush1.xpose.msra.mxu0 %v721
      %764 = vmatprep.subr.mxu0 0.0
      %765 = vmatpush1.xpose.msra.mxu0 %v724
      %766 = vmatprep.subr.mxu0 0.0
      %767 = vmatpush1.xpose.msra.mxu0 %v727
      %768 = vmatprep.subr.mxu0 0.0
      %769 = vmatpush1.xpose.msra.mxu0 %v730
      %770 = vmatprep.subr.mxu0 0.0
      %771 = vmatpush1.xpose.msra.mxu0 %v733
      %772 = vmatprep.subr.mxu0 0.0
      %773 = vmatpush1.xpose.msra.mxu0 %v736
      %774 = vmatprep.subr.mxu0 0.0
      %775 = vmatpush1.xpose.msra.mxu0 %v739
      %776 = vmatprep.subr.mxu0 0.0
      %777 = vmatpush1.xpose.msra.mxu0 %v742
      %778 = vmatprep.subr.mxu0 0.0
      %779 = vmatpush1.xpose.msra.mxu0 %v745
      %780 = vmatprep.subr.mxu0 0.0
      %781 = vmatpush1.xpose.msra.mxu0 %v748
      %782 = vmatprep.subr.mxu0 0.0
      %783 = vmatpush1.xpose.msra.mxu0 0.0
      %784 = vmatprep.subr.mxu0 0.0
      %785 = vmatpush1.xpose.msra.mxu0 0.0
      %786 = vmatprep.subr.mxu0 0.0
      %787 = vmatpush1.xpose.msra.mxu0 0.0
      %788 = vmatprep.subr.mxu0 0.0
      %789 = vmatpush1.xpose.msra.mxu0 0.0
      %790 = vmatprep.subr.mxu0 0.0
      %791 = vmatpush1.xpose.msra.mxu0 0.0
      %792 = vmatprep.subr.mxu0 0.0
      %793 = vmatpush1.xpose.msra.mxu0 0.0
      %794 = vmatprep.subr.mxu0 0.0
      %795 = vmatpush1.xpose.msra.mxu0 0.0
      %796 = vmatprep.subr.mxu0 0.0
      %797 = vmatpush1.xpose.msra.mxu0 0.0
      %798 = vmatprep.subr.mxu0 0.0
      %799 = vmatpush1.xpose.msra.mxu0 0.0
      %800 = vmatprep.subr.mxu0 0.0
      %801 = vmatpush1.xpose.msra.mxu0 0.0
      %802 = vmatprep.subr.mxu0 0.0
      %803 = vmatpush1.xpose.msra.mxu0 0.0
      %804 = vmatprep.subr.mxu0 0.0
      %805 = vmatpush1.xpose.msra.mxu0 0.0
      %806 = vmatprep.subr.mxu0 0.0
      %807 = vmatpush1.xpose.msra.mxu0 0.0
      %808 = vmatprep.subr.mxu0 0.0
      %809 = vmatpush1.xpose.msra.mxu0 0.0
      %810 = vmatprep.subr.mxu0 0.0
      %811 = vmatpush1.xpose.msra.mxu0 0.0
      %812 = vmatprep.subr.mxu0 0.0
      %813 = vmatpush1.xpose.msra.mxu0 0.0
      %814 = vmatprep.mubr.f32.mxu0 0.0
      %815 = vmatmul.mubr.f32.gmra.mrb[0].mxu0 %v700
      %v816 = vpop.f32.mrb[0].mxu0
      %v817 = vadd.f32 %v310, %v816
      %v818 = vpop.f32.mrb[0].mxu0
      %819 = vdwg.mxu0
      %v821 = vsel %vm335, %v112, 0
      %v824 = vsel %vm335, %v180, 0
      %v827 = vsel %vm335, %v181, 0
      %v830 = vsel %vm335, %v182, 0
      %v833 = vsel %vm335, %v183, 0
      %v836 = vsel %vm335, %v184, 0
      %v839 = vsel %vm335, %v185, 0
      %v842 = vsel %vm335, %v186, 0
      %v845 = vsel %vm335, %v187, 0
      %v848 = vsel %vm335, %v188, 0
      %v851 = vsel %vm335, %v189, 0
      %v854 = vsel %vm335, %v190, 0
      %v857 = vsel %vm335, %v191, 0
      %v860 = vsel %vm335, %v192, 0
      %v863 = vsel %vm335, %v193, 0
      %v866 = vsel %vm335, %v194, 0
      %v869 = vsel %vm335, %v195, 0
      %871 = vmatprep.subr.mxu0 0.0
      %872 = vmatpush1.xpose.msra.mxu0 %v824
      %873 = vmatprep.subr.mxu0 0.0
      %874 = vmatpush1.xpose.msra.mxu0 %v827
      %875 = vmatprep.subr.mxu0 0.0
      %876 = vmatpush1.xpose.msra.mxu0 %v830
      %877 = vmatprep.subr.mxu0 0.0
      %878 = vmatpush1.xpose.msra.mxu0 %v833
      %879 = vmatprep.subr.mxu0 0.0
      %880 = vmatpush1.xpose.msra.mxu0 %v836
      %881 = vmatprep.subr.mxu0 0.0
      %882 = vmatpush1.xpose.msra.mxu0 %v839
      %883 = vmatprep.subr.mxu0 0.0
      %884 = vmatpush1.xpose.msra.mxu0 %v842
      %885 = vmatprep.subr.mxu0 0.0
      %886 = vmatpush1.xpose.msra.mxu0 %v845
      %887 = vmatprep.subr.mxu0 0.0
      %888 = vmatpush1.xpose.msra.mxu0 %v848
      %889 = vmatprep.subr.mxu0 0.0
      %890 = vmatpush1.xpose.msra.mxu0 %v851
      %891 = vmatprep.subr.mxu0 0.0
      %892 = vmatpush1.xpose.msra.mxu0 %v854
      %893 = vmatprep.subr.mxu0 0.0
      %894 = vmatpush1.xpose.msra.mxu0 %v857
      %895 = vmatprep.subr.mxu0 0.0
      %896 = vmatpush1.xpose.msra.mxu0 %v860
      %897 = vmatprep.subr.mxu0 0.0
      %898 = vmatpush1.xpose.msra.mxu0 %v863
      %899 = vmatprep.subr.mxu0 0.0
      %900 = vmatpush1.xpose.msra.mxu0 %v866
      %901 = vmatprep.subr.mxu0 0.0
      %902 = vmatpush1.xpose.msra.mxu0 %v869
      %903 = vmatprep.subr.mxu0 0.0
      %904 = vmatpush1.xpose.msra.mxu0 0.0
      %905 = vmatprep.subr.mxu0 0.0
      %906 = vmatpush1.xpose.msra.mxu0 0.0
      %907 = vmatprep.subr.mxu0 0.0
      %908 = vmatpush1.xpose.msra.mxu0 0.0
      %909 = vmatprep.subr.mxu0 0.0
      %910 = vmatpush1.xpose.msra.mxu0 0.0
      %911 = vmatprep.subr.mxu0 0.0
      %912 = vmatpush1.xpose.msra.mxu0 0.0
      %913 = vmatprep.subr.mxu0 0.0
      %914 = vmatpush1.xpose.msra.mxu0 0.0
      %915 = vmatprep.subr.mxu0 0.0
      %916 = vmatpush1.xpose.msra.mxu0 0.0
      %917 = vmatprep.subr.mxu0 0.0
      %918 = vmatpush1.xpose.msra.mxu0 0.0
      %919 = vmatprep.subr.mxu0 0.0
      %920 = vmatpush1.xpose.msra.mxu0 0.0
      %921 = vmatprep.subr.mxu0 0.0
      %922 = vmatpush1.xpose.msra.mxu0 0.0
      %923 = vmatprep.subr.mxu0 0.0
      %924 = vmatpush1.xpose.msra.mxu0 0.0
      %925 = vmatprep.subr.mxu0 0.0
      %926 = vmatpush1.xpose.msra.mxu0 0.0
      %927 = vmatprep.subr.mxu0 0.0
      %928 = vmatpush1.xpose.msra.mxu0 0.0
      %929 = vmatprep.subr.mxu0 0.0
      %930 = vmatpush1.xpose.msra.mxu0 0.0
      %931 = vmatprep.subr.mxu0 0.0
      %932 = vmatpush1.xpose.msra.mxu0 0.0
      %933 = vmatprep.subr.mxu0 0.0
      %934 = vmatpush1.xpose.msra.mxu0 0.0
      %935 = vmatprep.mubr.f32.mxu0 0.0
      %936 = vmatmul.mubr.f32.gmra.mrb[0].mxu0 %v821
      %v937 = vpop.f32.mrb[0].mxu0
      %v938 = vadd.f32 %v314, %v937
      %v939 = vpop.f32.mrb[0].mxu0
      %940 = vdwg.mxu0
      %v942 = vsel %vm335, %v113, 0
      %v945 = vsel %vm335, %v196, 0
      %v948 = vsel %vm335, %v197, 0
      %v951 = vsel %vm335, %v198, 0
      %v954 = vsel %vm335, %v199, 0
      %v957 = vsel %vm335, %v200, 0
      %v960 = vsel %vm335, %v201, 0
      %v963 = vsel %vm335, %v202, 0
      %v966 = vsel %vm335, %v203, 0
      %v969 = vsel %vm335, %v204, 0
      %v972 = vsel %vm335, %v205, 0
      %v975 = vsel %vm335, %v206, 0
      %v978 = vsel %vm335, %v207, 0
      %v981 = vsel %vm335, %v208, 0
      %v984 = vsel %vm335, %v209, 0
      %v987 = vsel %vm335, %v210, 0
      %v990 = vsel %vm335, %v211, 0
      %992 = vmatprep.subr.mxu0 0.0
      %993 = vmatpush1.xpose.msra.mxu0 %v945
      %994 = vmatprep.subr.mxu0 0.0
      %995 = vmatpush1.xpose.msra.mxu0 %v948
      %996 = vmatprep.subr.mxu0 0.0
      %997 = vmatpush1.xpose.msra.mxu0 %v951
      %998 = vmatprep.subr.mxu0 0.0
      %999 = vmatpush1.xpose.msra.mxu0 %v954
      %1000 = vmatprep.subr.mxu0 0.0
      %1001 = vmatpush1.xpose.msra.mxu0 %v957
      %1002 = vmatprep.subr.mxu0 0.0
      %1003 = vmatpush1.xpose.msra.mxu0 %v960
      %1004 = vmatprep.subr.mxu0 0.0
      %1005 = vmatpush1.xpose.msra.mxu0 %v963
      %1006 = vmatprep.subr.mxu0 0.0
      %1007 = vmatpush1.xpose.msra.mxu0 %v966
      %1008 = vmatprep.subr.mxu0 0.0
      %1009 = vmatpush1.xpose.msra.mxu0 %v969
      %1010 = vmatprep.subr.mxu0 0.0
      %1011 = vmatpush1.xpose.msra.mxu0 %v972
      %1012 = vmatprep.subr.mxu0 0.0
      %1013 = vmatpush1.xpose.msra.mxu0 %v975
      %1014 = vmatprep.subr.mxu0 0.0
      %1015 = vmatpush1.xpose.msra.mxu0 %v978
      %1016 = vmatprep.subr.mxu0 0.0
      %1017 = vmatpush1.xpose.msra.mxu0 %v981
      %1018 = vmatprep.subr.mxu0 0.0
      %1019 = vmatpush1.xpose.msra.mxu0 %v984
      %1020 = vmatprep.subr.mxu0 0.0
      %1021 = vmatpush1.xpose.msra.mxu0 %v987
      %1022 = vmatprep.subr.mxu0 0.0
      %1023 = vmatpush1.xpose.msra.mxu0 %v990
      %1024 = vmatprep.subr.mxu0 0.0
      %1025 = vmatpush1.xpose.msra.mxu0 0.0
      %1026 = vmatprep.subr.mxu0 0.0
      %1027 = vmatpush1.xpose.msra.mxu0 0.0
      %1028 = vmatprep.subr.mxu0 0.0
      %1029 = vmatpush1.xpose.msra.mxu0 0.0
      %1030 = vmatprep.subr.mxu0 0.0
      %1031 = vmatpush1.xpose.msra.mxu0 0.0
      %1032 = vmatprep.subr.mxu0 0.0
      %1033 = vmatpush1.xpose.msra.mxu0 0.0
      %1034 = vmatprep.subr.mxu0 0.0
      %1035 = vmatpush1.xpose.msra.mxu0 0.0
      %1036 = vmatprep.subr.mxu0 0.0
      %1037 = vmatpush1.xpose.msra.mxu0 0.0
      %1038 = vmatprep.subr.mxu0 0.0
      %1039 = vmatpush1.xpose.msra.mxu0 0.0
      %1040 = vmatprep.subr.mxu0 0.0
      %1041 = vmatpush1.xpose.msra.mxu0 0.0
      %1042 = vmatprep.subr.mxu0 0.0
      %1043 = vmatpush1.xpose.msra.mxu0 0.0
      %1044 = vmatprep.subr.mxu0 0.0
      %1045 = vmatpush1.xpose.msra.mxu0 0.0
      %1046 = vmatprep.subr.mxu0 0.0
      %1047 = vmatpush1.xpose.msra.mxu0 0.0
      %1048 = vmatprep.subr.mxu0 0.0
      %1049 = vmatpush1.xpose.msra.mxu0 0.0
      %1050 = vmatprep.subr.mxu0 0.0
      %1051 = vmatpush1.xpose.msra.mxu0 0.0
      %1052 = vmatprep.subr.mxu0 0.0
      %1053 = vmatpush1.xpose.msra.mxu0 0.0
      %1054 = vmatprep.subr.mxu0 0.0
      %1055 = vmatpush1.xpose.msra.mxu0 0.0
      %1056 = vmatprep.mubr.f32.mxu0 0.0
      %1057 = vmatmul.mubr.f32.gmra.mrb[0].mxu0 %v942
      %v1058 = vpop.f32.mrb[0].mxu0
      %v1059 = vadd.f32 %v318, %v1058
      %v1060 = vpop.f32.mrb[0].mxu0
      %1061 = vdwg.mxu0
      %v1063 = vsel %vm335, %v114, 0
      %v1066 = vsel %vm335, %v212, 0
      %v1069 = vsel %vm335, %v213, 0
      %v1072 = vsel %vm335, %v214, 0
      %v1075 = vsel %vm335, %v215, 0
      %v1078 = vsel %vm335, %v216, 0
      %v1081 = vsel %vm335, %v217, 0
      %v1084 = vsel %vm335, %v218, 0
      %v1087 = vsel %vm335, %v219, 0
      %v1090 = vsel %vm335, %v220, 0
      %v1093 = vsel %vm335, %v221, 0
      %v1096 = vsel %vm335, %v222, 0
      %v1099 = vsel %vm335, %v223, 0
      %v1102 = vsel %vm335, %v224, 0
      %v1105 = vsel %vm335, %v225, 0
      %v1108 = vsel %vm335, %v226, 0
      %v1111 = vsel %vm335, %v227, 0
      %1113 = vmatprep.subr.mxu0 0.0
      %1114 = vmatpush1.xpose.msra.mxu0 %v1066
      %1115 = vmatprep.subr.mxu0 0.0
      %1116 = vmatpush1.xpose.msra.mxu0 %v1069
      %1117 = vmatprep.subr.mxu0 0.0
      %1118 = vmatpush1.xpose.msra.mxu0 %v1072
      %1119 = vmatprep.subr.mxu0 0.0
      %1120 = vmatpush1.xpose.msra.mxu0 %v1075
      %1121 = vmatprep.subr.mxu0 0.0
      %1122 = vmatpush1.xpose.msra.mxu0 %v1078
      %1123 = vmatprep.subr.mxu0 0.0
      %1124 = vmatpush1.xpose.msra.mxu0 %v1081
      %1125 = vmatprep.subr.mxu0 0.0
      %1126 = vmatpush1.xpose.msra.mxu0 %v1084
      %1127 = vmatprep.subr.mxu0 0.0
      %1128 = vmatpush1.xpose.msra.mxu0 %v1087
      %1129 = vmatprep.subr.mxu0 0.0
      %1130 = vmatpush1.xpose.msra.mxu0 %v1090
      %1131 = vmatprep.subr.mxu0 0.0
      %1132 = vmatpush1.xpose.msra.mxu0 %v1093
      %1133 = vmatprep.subr.mxu0 0.0
      %1134 = vmatpush1.xpose.msra.mxu0 %v1096
      %1135 = vmatprep.subr.mxu0 0.0
      %1136 = vmatpush1.xpose.msra.mxu0 %v1099
      %1137 = vmatprep.subr.mxu0 0.0
      %1138 = vmatpush1.xpose.msra.mxu0 %v1102
      %1139 = vmatprep.subr.mxu0 0.0
      %1140 = vmatpush1.xpose.msra.mxu0 %v1105
      %1141 = vmatprep.subr.mxu0 0.0
      %1142 = vmatpush1.xpose.msra.mxu0 %v1108
      %1143 = vmatprep.subr.mxu0 0.0
      %1144 = vmatpush1.xpose.msra.mxu0 %v1111
      %1145 = vmatprep.subr.mxu0 0.0
      %1146 = vmatpush1.xpose.msra.mxu0 0.0
      %1147 = vmatprep.subr.mxu0 0.0
      %1148 = vmatpush1.xpose.msra.mxu0 0.0
      %1149 = vmatprep.subr.mxu0 0.0
      %1150 = vmatpush1.xpose.msra.mxu0 0.0
      %1151 = vmatprep.subr.mxu0 0.0
      %1152 = vmatpush1.xpose.msra.mxu0 0.0
      %1153 = vmatprep.subr.mxu0 0.0
      %1154 = vmatpush1.xpose.msra.mxu0 0.0
      %1155 = vmatprep.subr.mxu0 0.0
      %1156 = vmatpush1.xpose.msra.mxu0 0.0
      %1157 = vmatprep.subr.mxu0 0.0
      %1158 = vmatpush1.xpose.msra.mxu0 0.0
      %1159 = vmatprep.subr.mxu0 0.0
      %1160 = vmatpush1.xpose.msra.mxu0 0.0
      %1161 = vmatprep.subr.mxu0 0.0
      %1162 = vmatpush1.xpose.msra.mxu0 0.0
      %1163 = vmatprep.subr.mxu0 0.0
      %1164 = vmatpush1.xpose.msra.mxu0 0.0
      %1165 = vmatprep.subr.mxu0 0.0
      %1166 = vmatpush1.xpose.msra.mxu0 0.0
      %1167 = vmatprep.subr.mxu0 0.0
      %1168 = vmatpush1.xpose.msra.mxu0 0.0
      %1169 = vmatprep.subr.mxu0 0.0
      %1170 = vmatpush1.xpose.msra.mxu0 0.0
      %1171 = vmatprep.subr.mxu0 0.0
      %1172 = vmatpush1.xpose.msra.mxu0 0.0
      %1173 = vmatprep.subr.mxu0 0.0
      %1174 = vmatpush1.xpose.msra.mxu0 0.0
      %1175 = vmatprep.subr.mxu0 0.0
      %1176 = vmatpush1.xpose.msra.mxu0 0.0
      %1177 = vmatprep.mubr.f32.mxu0 0.0
      %1178 = vmatmul.mubr.f32.gmra.mrb[0].mxu0 %v1063
      %v1179 = vpop.f32.mrb[0].mxu0
      %v1180 = vadd.f32 %v322, %v1179
      %v1181 = vpop.f32.mrb[0].mxu0
      %1182 = vdwg.mxu0
      %v1184 = vsel %vm335, %v115, 0
      %v1187 = vsel %vm335, %v228, 0
      %v1190 = vsel %vm335, %v229, 0
      %v1193 = vsel %vm335, %v230, 0
      %v1196 = vsel %vm335, %v231, 0
      %v1199 = vsel %vm335, %v232, 0
      %v1202 = vsel %vm335, %v233, 0
      %v1205 = vsel %vm335, %v234, 0
      %v1208 = vsel %vm335, %v235, 0
      %v1211 = vsel %vm335, %v236, 0
      %v1214 = vsel %vm335, %v237, 0
      %v1217 = vsel %vm335, %v238, 0
      %v1220 = vsel %vm335, %v239, 0
      %v1223 = vsel %vm335, %v240, 0
      %v1226 = vsel %vm335, %v241, 0
      %v1229 = vsel %vm335, %v242, 0
      %v1232 = vsel %vm335, %v243, 0
      %1234 = vmatprep.subr.mxu0 0.0
      %1235 = vmatpush1.xpose.msra.mxu0 %v1187
      %1236 = vmatprep.subr.mxu0 0.0
      %1237 = vmatpush1.xpose.msra.mxu0 %v1190
      %1238 = vmatprep.subr.mxu0 0.0
      %1239 = vmatpush1.xpose.msra.mxu0 %v1193
      %1240 = vmatprep.subr.mxu0 0.0
      %1241 = vmatpush1.xpose.msra.mxu0 %v1196
      %1242 = vmatprep.subr.mxu0 0.0
      %1243 = vmatpush1.xpose.msra.mxu0 %v1199
      %1244 = vmatprep.subr.mxu0 0.0
      %1245 = vmatpush1.xpose.msra.mxu0 %v1202
      %1246 = vmatprep.subr.mxu0 0.0
      %1247 = vmatpush1.xpose.msra.mxu0 %v1205
      %1248 = vmatprep.subr.mxu0 0.0
      %1249 = vmatpush1.xpose.msra.mxu0 %v1208
      %1250 = vmatprep.subr.mxu0 0.0
      %1251 = vmatpush1.xpose.msra.mxu0 %v1211
      %1252 = vmatprep.subr.mxu0 0.0
      %1253 = vmatpush1.xpose.msra.mxu0 %v1214
      %1254 = vmatprep.subr.mxu0 0.0
      %1255 = vmatpush1.xpose.msra.mxu0 %v1217
      %1256 = vmatprep.subr.mxu0 0.0
      %1257 = vmatpush1.xpose.msra.mxu0 %v1220
      %1258 = vmatprep.subr.mxu0 0.0
      %1259 = vmatpush1.xpose.msra.mxu0 %v1223
      %1260 = vmatprep.subr.mxu0 0.0
      %1261 = vmatpush1.xpose.msra.mxu0 %v1226
      %1262 = vmatprep.subr.mxu0 0.0
      %1263 = vmatpush1.xpose.msra.mxu0 %v1229
      %1264 = vmatprep.subr.mxu0 0.0
      %1265 = vmatpush1.xpose.msra.mxu0 %v1232
      %1266 = vmatprep.subr.mxu0 0.0
      %1267 = vmatpush1.xpose.msra.mxu0 0.0
      %1268 = vmatprep.subr.mxu0 0.0
      %1269 = vmatpush1.xpose.msra.mxu0 0.0
      %1270 = vmatprep.subr.mxu0 0.0
      %1271 = vmatpush1.xpose.msra.mxu0 0.0
      %1272 = vmatprep.subr.mxu0 0.0
      %1273 = vmatpush1.xpose.msra.mxu0 0.0
      %1274 = vmatprep.subr.mxu0 0.0
      %1275 = vmatpush1.xpose.msra.mxu0 0.0
      %1276 = vmatprep.subr.mxu0 0.0
      %1277 = vmatpush1.xpose.msra.mxu0 0.0
      %1278 = vmatprep.subr.mxu0 0.0
      %1279 = vmatpush1.xpose.msra.mxu0 0.0
      %1280 = vmatprep.subr.mxu0 0.0
      %1281 = vmatpush1.xpose.msra.mxu0 0.0
      %1282 = vmatprep.subr.mxu0 0.0
      %1283 = vmatpush1.xpose.msra.mxu0 0.0
      %1284 = vmatprep.subr.mxu0 0.0
      %1285 = vmatpush1.xpose.msra.mxu0 0.0
      %1286 = vmatprep.subr.mxu0 0.0
      %1287 = vmatpush1.xpose.msra.mxu0 0.0
      %1288 = vmatprep.subr.mxu0 0.0
      %1289 = vmatpush1.xpose.msra.mxu0 0.0
      %1290 = vmatprep.subr.mxu0 0.0
      %1291 = vmatpush1.xpose.msra.mxu0 0.0
      %1292 = vmatprep.subr.mxu0 0.0
      %1293 = vmatpush1.xpose.msra.mxu0 0.0
      %1294 = vmatprep.subr.mxu0 0.0
      %1295 = vmatpush1.xpose.msra.mxu0 0.0
      %1296 = vmatprep.subr.mxu0 0.0
      %1297 = vmatpush1.xpose.msra.mxu0 0.0
      %1298 = vmatprep.mubr.f32.mxu0 0.0
      %1299 = vmatmul.mubr.f32.gmra.mrb[0].mxu0 %v1184
      %v1300 = vpop.f32.mrb[0].mxu0
      %v1301 = vadd.f32 %v326, %v1300
      %v1302 = vpop.f32.mrb[0].mxu0
      %1303 = vdwg.mxu0
      %1304 = vst [vmem:[#allocation4] sm:$0xff] %v454
      %1305 = vst [vmem:[#allocation4 + $0x8] sm:$0xff] %v575
      %1306 = vst [vmem:[#allocation4 + $0x10] sm:$0xff] %v696
      %1307 = vst [vmem:[#allocation4 + $0x18] sm:$0xff] %v817
      %1308 = vst [vmem:[#allocation4 + $0x20] sm:$0xff] %v938
      %1309 = vst [vmem:[#allocation4 + $0x28] sm:$0xff] %v1059
      %1310 = vst [vmem:[#allocation4 + $0x30] sm:$0xff] %v1180
      %1311 = vst [vmem:[#allocation4 + $0x38] sm:$0xff] %v1301
    $region45: #{ctc_loss.2} parent=1 // pred_fallthru
      _
    %v1312 = vld [vmem:[#allocation5] sm:$0xff]
    %v1313 = vld [vmem:[#allocation5 + $0x8] sm:$0xff]
    %v1314 = vld [vmem:[#allocation5 + $0x10] sm:$0xff]
    %v1315 = vld [vmem:[#allocation5 + $0x18] sm:$0xff]
    %v1316 = vld [vmem:[#allocation5 + $0x20] sm:$0xff]
    %v1317 = vld [vmem:[#allocation5 + $0x28] sm:$0xff]
    %v1318 = vld [vmem:[#allocation5 + $0x30] sm:$0xff]
    %v1319 = vld [vmem:[#allocation5 + $0x38] sm:$0xff]
    %v1320 = vld [vmem:[#allocation8] sm:$0xff]
    %v1321 = vld [vmem:[#allocation8 + $0x8] sm:$0xff]
    %v1322 = vld [vmem:[#allocation8 + $0x10] sm:$0xff]
    %v1323 = vld [vmem:[#allocation8 + $0x18] sm:$0xff]
    %v1324 = vld [vmem:[#allocation10] sm:$0x1]
    %v1326 = vlaneseq
    %v1327 = vshrl.u32 %v1326, 7
    %v1328 = vsub.s32 0, %v1327
    %v1329 = vrot.slane %v1324, %v1328
    %vm1331 = vcmask 261120
    %v1333 = vsel %vm1331, %v1312, 0
    %v1336 = vsel %vm1331, %v1313, 0
    %v1339 = vsel %vm1331, %v1314, 0
    %v1342 = vsel %vm1331, %v1315, 0
    %v1345 = vsel %vm1331, %v1316, 0
    %v1348 = vsel %vm1331, %v1317, 0
    %v1351 = vsel %vm1331, %v1318, 0
    %v1354 = vsel %vm1331, %v1319, 0
    %1356 = vmatprep.subr.mxu0 0.0
    %1357 = vmatpush1.msra.mxu0 %v1320
    %1358 = vmatprep.subr.mxu0 0.0
    %1359 = vmatpush1.msra.mxu0 %v1321
    %1360 = vmatprep.subr.mxu0 0.0
    %1361 = vmatpush1.msra.mxu0 %v1322
    %1362 = vmatprep.subr.mxu0 0.0
    %1363 = vmatpush1.msra.mxu0 %v1323
    %1364 = vmatprep.subr.mxu0 0.0
    %1365 = vmatpush1.msra.mxu0 0.0
    %1366 = vmatprep.subr.mxu0 0.0
    %1367 = vmatpush1.msra.mxu0 0.0
    %1368 = vmatprep.subr.mxu0 0.0
    %1369 = vmatpush1.msra.mxu0 0.0
    %1370 = vmatprep.subr.mxu0 0.0
    %1371 = vmatpush1.msra.mxu0 0.0
    %1372 = vmatprep.subr.mxu0 0.0
    %1373 = vmatpush1.msra.mxu0 0.0
    %1374 = vmatprep.subr.mxu0 0.0
    %1375 = vmatpush1.msra.mxu0 0.0
    %1376 = vmatprep.subr.mxu0 0.0
    %1377 = vmatpush1.msra.mxu0 0.0
    %1378 = vmatprep.subr.mxu0 0.0
    %1379 = vmatpush1.msra.mxu0 0.0
    %1380 = vmatprep.subr.mxu0 0.0
    %1381 = vmatpush1.msra.mxu0 0.0
    %1382 = vmatprep.subr.mxu0 0.0
    %1383 = vmatpush1.msra.mxu0 0.0
    %1384 = vmatprep.subr.mxu0 0.0
    %1385 = vmatpush1.msra.mxu0 0.0
    %1386 = vmatprep.subr.mxu0 0.0
    %1387 = vmatpush1.msra.mxu0 0.0
    %1388 = vmatprep.subr.mxu0 0.0
    %1389 = vmatpush1.msra.mxu0 0.0
    %1390 = vmatprep.subr.mxu0 0.0
    %1391 = vmatpush1.msra.mxu0 0.0
    %1392 = vmatprep.subr.mxu0 0.0
    %1393 = vmatpush1.msra.mxu0 0.0
    %1394 = vmatprep.subr.mxu0 0.0
    %1395 = vmatpush1.msra.mxu0 0.0
    %1396 = vmatprep.subr.mxu0 0.0
    %1397 = vmatpush1.msra.mxu0 0.0
    %1398 = vmatprep.subr.mxu0 0.0
    %1399 = vmatpush1.msra.mxu0 0.0
    %1400 = vmatprep.subr.mxu0 0.0
    %1401 = vmatpush1.msra.mxu0 0.0
    %1402 = vmatprep.subr.mxu0 0.0
    %1403 = vmatpush1.msra.mxu0 0.0
    %1404 = vmatprep.subr.mxu0 0.0
    %1405 = vmatpush1.msra.mxu0 0.0
    %1406 = vmatprep.subr.mxu0 0.0
    %1407 = vmatpush1.msra.mxu0 0.0
    %1408 = vmatprep.subr.mxu0 0.0
    %1409 = vmatpush1.msra.mxu0 0.0
    %1410 = vmatprep.subr.mxu0 0.0
    %1411 = vmatpush1.msra.mxu0 0.0
    %1412 = vmatprep.subr.mxu0 0.0
    %1413 = vmatpush1.msra.mxu0 0.0
    %1414 = vmatprep.subr.mxu0 0.0
    %1415 = vmatpush1.msra.mxu0 0.0
    %1416 = vmatprep.subr.mxu0 0.0
    %1417 = vmatpush1.msra.mxu0 0.0
    %1418 = vmatprep.subr.mxu0 0.0
    %1419 = vmatpush1.msra.mxu0 0.0
    %1420 = vmatprep.mubr.f32.mxu0 0.0
    %1421 = vmatmul.mubr.f32.gmra.mrb[0].mxu0 %v1333
    %v1422 = vpop.f32.mrb[0].mxu0
    %v1423 = vadd.f32 %v1329, %v1422
    %v1424 = vpop.f32.mrb[0].mxu0
    %1425 = vmatprep.mubr.f32.mxu0 0.0
    %1426 = vmatmul.mubr.f32.gmra.mrb[0].mxu0 %v1336
    %v1427 = vpop.f32.mrb[0].mxu0
    %v1428 = vadd.f32 %v1329, %v1427
    %v1429 = vpop.f32.mrb[0].mxu0
    %1430 = vmatprep.mubr.f32.mxu0 0.0
    %1431 = vmatmul.mubr.f32.gmra.mrb[0].mxu0 %v1339
    %v1432 = vpop.f32.mrb[0].mxu0
    %v1433 = vadd.f32 %v1329, %v1432
    %v1434 = vpop.f32.mrb[0].mxu0
    %1435 = vmatprep.mubr.f32.mxu0 0.0
    %1436 = vmatmul.mubr.f32.gmra.mrb[0].mxu0 %v1342
    %v1437 = vpop.f32.mrb[0].mxu0
    %v1438 = vadd.f32 %v1329, %v1437
    %v1439 = vpop.f32.mrb[0].mxu0
    %1440 = vmatprep.mubr.f32.mxu0 0.0
    %1441 = vmatmul.mubr.f32.gmra.mrb[0].mxu0 %v1345
    %v1442 = vpop.f32.mrb[0].mxu0
    %v1443 = vadd.f32 %v1329, %v1442
    %v1444 = vpop.f32.mrb[0].mxu0
    %1445 = vmatprep.mubr.f32.mxu0 0.0
    %1446 = vmatmul.mubr.f32.gmra.mrb[0].mxu0 %v1348
    %v1447 = vpop.f32.mrb[0].mxu0
    %v1448 = vadd.f32 %v1329, %v1447
    %v1449 = vpop.f32.mrb[0].mxu0
    %1450 = vmatprep.mubr.f32.mxu0 0.0
    %1451 = vmatmul.mubr.f32.gmra.mrb[0].mxu0 %v1351
    %v1452 = vpop.f32.mrb[0].mxu0
    %v1453 = vadd.f32 %v1329, %v1452
    %v1454 = vpop.f32.mrb[0].mxu0
    %1455 = vmatprep.mubr.f32.mxu0 0.0
    %1456 = vmatmul.mubr.f32.gmra.mrb[0].mxu0 %v1354
    %v1457 = vpop.f32.mrb[0].mxu0
    %v1458 = vadd.f32 %v1329, %v1457
    %v1459 = vpop.f32.mrb[0].mxu0
    %1460 = vdwg.mxu0
    %1461 = vmax.xlane.f32.xlu0 %v1423
    %v1462 = vpop.xlane.xlu0 %1461
    %1463 = vmax.xlane.f32.xlu0 %v1428
    %v1464 = vpop.xlane.xlu0 %1463
    %1465 = vmax.xlane.f32.xlu0 %v1433
    %v1466 = vpop.xlane.xlu0 %1465
    %1467 = vmax.xlane.f32.xlu0 %v1438
    %v1468 = vpop.xlane.xlu0 %1467
    %1469 = vmax.xlane.f32.xlu0 %v1443
    %v1470 = vpop.xlane.xlu0 %1469
    %1471 = vmax.xlane.f32.xlu0 %v1448
    %v1472 = vpop.xlane.xlu0 %1471
    %1473 = vmax.xlane.f32.xlu0 %v1453
    %v1474 = vpop.xlane.xlu0 %1473
    %1475 = vmax.xlane.f32.xlu0 %v1458
    %v1476 = vpop.xlane.xlu0 %1475
    %v1477 = vld [vmem:[#allocation2] sm:$0xff]
    %v1478 = vld [vmem:[#allocation2 + $0x8] sm:$0xff]
    %v1479 = vld [vmem:[#allocation2 + $0x10] sm:$0xff]
    %v1480 = vld [vmem:[#allocation2 + $0x18] sm:$0xff]
    %v1481 = vld [vmem:[#allocation2 + $0x20] sm:$0xff]
    %v1482 = vld [vmem:[#allocation2 + $0x28] sm:$0xff]
    %v1483 = vld [vmem:[#allocation2 + $0x30] sm:$0xff]
    %v1484 = vld [vmem:[#allocation2 + $0x38] sm:$0xff]
    %v1485 = vmax.f32 %v1477, %v1462
    %v1486 = vmax.f32 %v1478, %v1464
    %v1487 = vmax.f32 %v1479, %v1466
    %v1488 = vmax.f32 %v1480, %v1468
    %v1489 = vmax.f32 %v1481, %v1470
    %v1490 = vmax.f32 %v1482, %v1472
    %v1491 = vmax.f32 %v1483, %v1474
    %v1492 = vmax.f32 %v1484, %v1476
    %v1493 = vld [vmem:[#allocation3] sm:$0xff]
    %v1494 = vld [vmem:[#allocation3 + $0x8] sm:$0xff]
    %v1495 = vld [vmem:[#allocation3 + $0x10] sm:$0xff]
    %v1496 = vld [vmem:[#allocation3 + $0x18] sm:$0xff]
    %v1497 = vld [vmem:[#allocation3 + $0x20] sm:$0xff]
    %v1498 = vld [vmem:[#allocation3 + $0x28] sm:$0xff]
    %v1499 = vld [vmem:[#allocation3 + $0x30] sm:$0xff]
    %v1500 = vld [vmem:[#allocation3 + $0x38] sm:$0xff]
    %v1501 = vsub.f32 %v1477, %v1485
    %v1502 = vsub.f32 %v1478, %v1486
    %v1503 = vsub.f32 %v1479, %v1487
    %v1504 = vsub.f32 %v1480, %v1488
    %v1505 = vsub.f32 %v1481, %v1489
    %v1506 = vsub.f32 %v1482, %v1490
    %v1507 = vsub.f32 %v1483, %v1491
    %v1508 = vsub.f32 %v1484, %v1492
    %v1509 = vmul.f32 %v1501, 1.442695
    %v1510 = vpow.pop %v1509
    %v1511 = vmul.f32 %v1502, 1.442695
    %v1512 = vpow.pop %v1511
    %v1513 = vmul.f32 %v1503, 1.442695
    %v1514 = vpow.pop %v1513
    %v1515 = vmul.f32 %v1504, 1.442695
    %v1516 = vpow.pop %v1515
    %v1517 = vmul.f32 %v1505, 1.442695
    %v1518 = vpow.pop %v1517
    %v1519 = vmul.f32 %v1506, 1.442695
    %v1520 = vpow.pop %v1519
    %v1521 = vmul.f32 %v1507, 1.442695
    %v1522 = vpow.pop %v1521
    %v1523 = vmul.f32 %v1508, 1.442695
    %v1524 = vpow.pop %v1523
    %v1525 = vmul.f32 %v1493, %v1510
    %v1526 = vmul.f32 %v1494, %v1512
    %v1527 = vmul.f32 %v1495, %v1514
    %v1528 = vmul.f32 %v1496, %v1516
    %v1529 = vmul.f32 %v1497, %v1518
    %v1530 = vmul.f32 %v1498, %v1520
    %v1531 = vmul.f32 %v1499, %v1522
    %v1532 = vmul.f32 %v1500, %v1524
    %1534 = vset.pattern.permute.xlu0 0
    %1535 = vperm.xlu0 %1534, %v1485
    %v1536 = vpop.permute.xlu0 %1535
    %1539 = vset.pattern.permute.xlu0 0
    %1540 = vperm.xlu0 %1539, %v1486
    %v1541 = vpop.permute.xlu0 %1540
    %1544 = vset.pattern.permute.xlu0 0
    %1545 = vperm.xlu0 %1544, %v1487
    %v1546 = vpop.permute.xlu0 %1545
    %1549 = vset.pattern.permute.xlu0 0
    %1550 = vperm.xlu0 %1549, %v1488
    %v1551 = vpop.permute.xlu0 %1550
    %1554 = vset.pattern.permute.xlu0 0
    %1555 = vperm.xlu0 %1554, %v1489
    %v1556 = vpop.permute.xlu0 %1555
    %1559 = vset.pattern.permute.xlu0 0
    %1560 = vperm.xlu0 %1559, %v1490
    %v1561 = vpop.permute.xlu0 %1560
    %1564 = vset.pattern.permute.xlu0 0
    %1565 = vperm.xlu0 %1564, %v1491
    %v1566 = vpop.permute.xlu0 %1565
    %1569 = vset.pattern.permute.xlu0 0
    %1570 = vperm.xlu0 %1569, %v1492
    %v1571 = vpop.permute.xlu0 %1570
    %v1573 = vsub.f32 %v1423, %v1536
    %v1574 = vsub.f32 %v1428, %v1541
    %v1575 = vsub.f32 %v1433, %v1546
    %v1576 = vsub.f32 %v1438, %v1551
    %v1577 = vsub.f32 %v1443, %v1556
    %v1578 = vsub.f32 %v1448, %v1561
    %v1579 = vsub.f32 %v1453, %v1566
    %v1580 = vsub.f32 %v1458, %v1571
    %v1581 = vmul.f32 %v1573, 1.442695
    %v1582 = vpow.pop %v1581
    %v1583 = vmul.f32 %v1574, 1.442695
    %v1584 = vpow.pop %v1583
    %v1585 = vmul.f32 %v1575, 1.442695
    %v1586 = vpow.pop %v1585
    %v1587 = vmul.f32 %v1576, 1.442695
    %v1588 = vpow.pop %v1587
    %v1589 = vmul.f32 %v1577, 1.442695
    %v1590 = vpow.pop %v1589
    %v1591 = vmul.f32 %v1578, 1.442695
    %v1592 = vpow.pop %v1591
    %v1593 = vmul.f32 %v1579, 1.442695
    %v1594 = vpow.pop %v1593
    %v1595 = vmul.f32 %v1580, 1.442695
    %v1596 = vpow.pop %v1595
    %1597 = vadd.xlane.f32.xlu0 %v1582
    %v1598 = vpop.xlane.xlu0 %1597
    %1599 = vadd.xlane.f32.xlu0 %v1584
    %v1600 = vpop.xlane.xlu0 %1599
    %1601 = vadd.xlane.f32.xlu0 %v1586
    %v1602 = vpop.xlane.xlu0 %1601
    %1603 = vadd.xlane.f32.xlu0 %v1588
    %v1604 = vpop.xlane.xlu0 %1603
    %1605 = vadd.xlane.f32.xlu0 %v1590
    %v1606 = vpop.xlane.xlu0 %1605
    %1607 = vadd.xlane.f32.xlu0 %v1592
    %v1608 = vpop.xlane.xlu0 %1607
    %1609 = vadd.xlane.f32.xlu0 %v1594
    %v1610 = vpop.xlane.xlu0 %1609
    %1611 = vadd.xlane.f32.xlu0 %v1596
    %v1612 = vpop.xlane.xlu0 %1611
    %v1613 = vadd.f32 %v1525, %v1598
    %v1614 = vadd.f32 %v1526, %v1600
    %v1615 = vadd.f32 %v1527, %v1602
    %v1616 = vadd.f32 %v1528, %v1604
    %v1617 = vadd.f32 %v1529, %v1606
    %v1618 = vadd.f32 %v1530, %v1608
    %v1619 = vadd.f32 %v1531, %v1610
    %v1620 = vadd.f32 %v1532, %v1612
    %vm1621 = vcmask 7168
    %1622 = vst.msk [vmem:[#allocation3] sm:$0xff] %vm1621, %v1613
    %1623 = vst.msk [vmem:[#allocation3 + $0x8] sm:$0xff] %vm1621, %v1614
    %1624 = vst.msk [vmem:[#allocation3 + $0x10] sm:$0xff] %vm1621, %v1615
    %1625 = vst.msk [vmem:[#allocation3 + $0x18] sm:$0xff] %vm1621, %v1616
    %1626 = vst.msk [vmem:[#allocation3 + $0x20] sm:$0xff] %vm1621, %v1617
    %1627 = vst.msk [vmem:[#allocation3 + $0x28] sm:$0xff] %vm1621, %v1618
    %1628 = vst.msk [vmem:[#allocation3 + $0x30] sm:$0xff] %vm1621, %v1619
    %1629 = vst.msk [vmem:[#allocation3 + $0x38] sm:$0xff] %vm1621, %v1620
    %1630 = vst.msk [vmem:[#allocation2] sm:$0xff] %vm1621, %v1485
    %1631 = vst.msk [vmem:[#allocation2 + $0x8] sm:$0xff] %vm1621, %v1486
    %1632 = vst.msk [vmem:[#allocation2 + $0x10] sm:$0xff] %vm1621, %v1487
    %1633 = vst.msk [vmem:[#allocation2 + $0x18] sm:$0xff] %vm1621, %v1488
    %1634 = vst.msk [vmem:[#allocation2 + $0x20] sm:$0xff] %vm1621, %v1489
    %1635 = vst.msk [vmem:[#allocation2 + $0x28] sm:$0xff] %vm1621, %v1490
    %1636 = vst.msk [vmem:[#allocation2 + $0x30] sm:$0xff] %vm1621, %v1491
    %1637 = vst.msk [vmem:[#allocation2 + $0x38] sm:$0xff] %vm1621, %v1492
    // Predicated region
    $region46: #{ctc_loss.2} parent=1 // pred_check
      %p1638 = pneg %p87
    $region47: #{ctc_loss.2} parent=1 // pred_check_branch
      %1640 = sbr.rel (%p1638) target = $region49
    $region48: #{ctc_loss.2} parent=1 // pred_region
      %v1641 = vld [vmem:[#allocation2] sm:$0xff]
      %v1642 = vld [vmem:[#allocation2 + $0x8] sm:$0xff]
      %v1643 = vld [vmem:[#allocation2 + $0x10] sm:$0xff]
      %v1644 = vld [vmem:[#allocation2 + $0x18] sm:$0xff]
      %v1645 = vld [vmem:[#allocation2 + $0x20] sm:$0xff]
      %v1646 = vld [vmem:[#allocation2 + $0x28] sm:$0xff]
      %v1647 = vld [vmem:[#allocation2 + $0x30] sm:$0xff]
      %v1648 = vld [vmem:[#allocation2 + $0x38] sm:$0xff]
      %v1649 = vld [vmem:[#allocation3] sm:$0xff]
      %v1650 = vld [vmem:[#allocation3 + $0x8] sm:$0xff]
      %v1651 = vld [vmem:[#allocation3 + $0x10] sm:$0xff]
      %v1652 = vld [vmem:[#allocation3 + $0x18] sm:$0xff]
      %v1653 = vld [vmem:[#allocation3 + $0x20] sm:$0xff]
      %v1654 = vld [vmem:[#allocation3 + $0x28] sm:$0xff]
      %v1655 = vld [vmem:[#allocation3 + $0x30] sm:$0xff]
      %v1656 = vld [vmem:[#allocation3 + $0x38] sm:$0xff]
      %v1657 = vlog2.pop %v1649
      %v1658 = vmul.f32 %v1657, 0.6931472
      %v1659 = vlog2.pop %v1650
      %v1660 = vmul.f32 %v1659, 0.6931472
      %v1661 = vlog2.pop %v1651
      %v1662 = vmul.f32 %v1661, 0.6931472
      %v1663 = vlog2.pop %v1652
      %v1664 = vmul.f32 %v1663, 0.6931472
      %v1665 = vlog2.pop %v1653
      %v1666 = vmul.f32 %v1665, 0.6931472
      %v1667 = vlog2.pop %v1654
      %v1668 = vmul.f32 %v1667, 0.6931472
      %v1669 = vlog2.pop %v1655
      %v1670 = vmul.f32 %v1669, 0.6931472
      %v1671 = vlog2.pop %v1656
      %v1672 = vmul.f32 %v1671, 0.6931472
      %v1673 = vadd.f32 %v1641, %v1658
      %v1674 = vadd.f32 %v1642, %v1660
      %v1675 = vadd.f32 %v1643, %v1662
      %v1676 = vadd.f32 %v1644, %v1664
      %v1677 = vadd.f32 %v1645, %v1666
      %v1678 = vadd.f32 %v1646, %v1668
      %v1679 = vadd.f32 %v1647, %v1670
      %v1680 = vadd.f32 %v1648, %v1672
      %v1681 = vld [vmem:[#allocation4] sm:$0xff]
      %v1682 = vld [vmem:[#allocation4 + $0x8] sm:$0xff]
      %v1683 = vld [vmem:[#allocation4 + $0x10] sm:$0xff]
      %v1684 = vld [vmem:[#allocation4 + $0x18] sm:$0xff]
      %v1685 = vld [vmem:[#allocation4 + $0x20] sm:$0xff]
      %v1686 = vld [vmem:[#allocation4 + $0x28] sm:$0xff]
      %v1687 = vld [vmem:[#allocation4 + $0x30] sm:$0xff]
      %v1688 = vld [vmem:[#allocation4 + $0x38] sm:$0xff]
      %1690 = vset.pattern.permute.xlu0 0
      %1691 = vperm.xlu0 %1690, %v1673
      %v1692 = vpop.permute.xlu0 %1691
      %1695 = vset.pattern.permute.xlu0 0
      %1696 = vperm.xlu0 %1695, %v1674
      %v1697 = vpop.permute.xlu0 %1696
      %1700 = vset.pattern.permute.xlu0 0
      %1701 = vperm.xlu0 %1700, %v1675
      %v1702 = vpop.permute.xlu0 %1701
      %1705 = vset.pattern.permute.xlu0 0
      %1706 = vperm.xlu0 %1705, %v1676
      %v1707 = vpop.permute.xlu0 %1706
      %1710 = vset.pattern.permute.xlu0 0
      %1711 = vperm.xlu0 %1710, %v1677
      %v1712 = vpop.permute.xlu0 %1711
      %1715 = vset.pattern.permute.xlu0 0
      %1716 = vperm.xlu0 %1715, %v1678
      %v1717 = vpop.permute.xlu0 %1716
      %1720 = vset.pattern.permute.xlu0 0
      %1721 = vperm.xlu0 %1720, %v1679
      %v1722 = vpop.permute.xlu0 %1721
      %1725 = vset.pattern.permute.xlu0 0
      %1726 = vperm.xlu0 %1725, %v1680
      %v1727 = vpop.permute.xlu0 %1726
      %v1729 = vsub.f32 %v1681, %v1692
      %v1730 = vsub.f32 %v1682, %v1697
      %v1731 = vsub.f32 %v1683, %v1702
      %v1732 = vsub.f32 %v1684, %v1707
      %v1733 = vsub.f32 %v1685, %v1712
      %v1734 = vsub.f32 %v1686, %v1717
      %v1735 = vsub.f32 %v1687, %v1722
      %v1736 = vsub.f32 %v1688, %v1727
      %v1745 = vrot.slane %v1730, 7
      %vm1746 = vcmask 1041409
      %v1747 = vsel %vm1746, %v1745, %v1729
      %v1748 = vrot.slane %v1731, 6
      %vm1749 = vcmask 1042434
      %v1750 = vsel %vm1749, %v1748, %v1747
      %v1751 = vrot.slane %v1732, 5
      %vm1752 = vcmask 1043459
      %v1753 = vsel %vm1752, %v1751, %v1750
      %v1754 = vrot.slane %v1733, 4
      %vm1755 = vcmask 1044484
      %v1756 = vsel %vm1755, %v1754, %v1753
      %v1757 = vrot.slane %v1734, 3
      %vm1758 = vcmask 1045509
      %v1759 = vsel %vm1758, %v1757, %v1756
      %v1760 = vrot.slane %v1735, 2
      %vm1761 = vcmask 1046534
      %v1762 = vsel %vm1761, %v1760, %v1759
      %v1763 = vrot.slane %v1736, 1
      %vm1764 = vcmask 1047559
      %v1765 = vsel %vm1764, %v1763, %v1762
      %1767 = vst [vmem:[#allocation14] sm:$0xff] %v1765
      %v1768 = vsel %vm1749, %v1745, %v1729
      %v1769 = vsel %vm1752, %v1748, %v1768
      %v1770 = vsel %vm1755, %v1751, %v1769
      %v1771 = vsel %vm1758, %v1754, %v1770
      %v1772 = vsel %vm1761, %v1757, %v1771
      %v1773 = vsel %vm1764, %v1760, %v1772
      %s1776 = scalar_lea.vmem [#allocation14], 8
      %1777 = vst [vmem:[%s1776 - $0x1] sm:$0xfe] %v1773
      %1778 = vst [vmem:[%s1776 + $0x7] sm:$0x1] %v1763
      %v1779 = vsel %vm1752, %v1745, %v1729
      %v1780 = vsel %vm1755, %v1748, %v1779
      %v1781 = vsel %vm1758, %v1751, %v1780
      %v1782 = vsel %vm1761, %v1754, %v1781
      %v1783 = vsel %vm1764, %v1757, %v1782
      %v1784 = vsel %vm1746, %v1763, %v1760
      %s1787 = scalar_lea.vmem [#allocation14], 16
      %1788 = vst [vmem:[%s1787 - $0x2] sm:$0xfc] %v1783
      %1789 = vst [vmem:[%s1787 + $0x6] sm:$0x3] %v1784
      %v1790 = vsel %vm1755, %v1745, %v1729
      %v1791 = vsel %vm1758, %v1748, %v1790
      %v1792 = vsel %vm1761, %v1751, %v1791
      %v1793 = vsel %vm1764, %v1754, %v1792
      %v1794 = vsel %vm1746, %v1760, %v1757
      %v1795 = vsel %vm1749, %v1763, %v1794
      %s1798 = scalar_lea.vmem [#allocation14], 24
      %1799 = vst [vmem:[%s1798 - $0x3] sm:$0xf8] %v1793
      %1800 = vst [vmem:[%s1798 + $0x5] sm:$0x7] %v1795
      %v1801 = vsel %vm1758, %v1745, %v1729
      %v1802 = vsel %vm1761, %v1748, %v1801
      %v1803 = vsel %vm1764, %v1751, %v1802
      %v1804 = vsel %vm1746, %v1757, %v1754
      %v1805 = vsel %vm1749, %v1760, %v1804
      %v1806 = vsel %vm1752, %v1763, %v1805
      %s1809 = scalar_lea.vmem [#allocation14], 32
      %1810 = vst [vmem:[%s1809 - $0x4] sm:$0xf0] %v1803
      %1811 = vst [vmem:[%s1809 + $0x4] sm:$0xf] %v1806
      %v1812 = vsel %vm1761, %v1745, %v1729
      %v1813 = vsel %vm1764, %v1748, %v1812
      %v1814 = vsel %vm1746, %v1754, %v1751
      %v1815 = vsel %vm1749, %v1757, %v1814
      %v1816 = vsel %vm1752, %v1760, %v1815
      %v1817 = vsel %vm1755, %v1763, %v1816
      %s1820 = scalar_lea.vmem [#allocation14], 40
      %1821 = vst [vmem:[%s1820 - $0x5] sm:$0xe0] %v1813
      %1822 = vst [vmem:[%s1820 + $0x3] sm:$0x1f] %v1817
      %v1823 = vsel %vm1764, %v1745, %v1729
      %v1824 = vsel %vm1746, %v1751, %v1748
      %v1825 = vsel %vm1749, %v1754, %v1824
      %v1826 = vsel %vm1752, %v1757, %v1825
      %v1827 = vsel %vm1755, %v1760, %v1826
      %v1828 = vsel %vm1758, %v1763, %v1827
      %s1831 = scalar_lea.vmem [#allocation14], 48
      %1832 = vst [vmem:[%s1831 - $0x6] sm:$0xc0] %v1823
      %1833 = vst [vmem:[%s1831 + $0x2] sm:$0x3f] %v1828
      %v1834 = vsel %vm1746, %v1748, %v1745
      %v1835 = vsel %vm1749, %v1751, %v1834
      %v1836 = vsel %vm1752, %v1754, %v1835
      %v1837 = vsel %vm1755, %v1757, %v1836
      %v1838 = vsel %vm1758, %v1760, %v1837
      %v1839 = vsel %vm1761, %v1763, %v1838
      %s1842 = scalar_lea.vmem [#allocation14], 56
      %1843 = vst [vmem:[%s1842 - $0x7] sm:$0x80] %v1729
      %1844 = vst [vmem:[%s1842 + $0x1] sm:$0x7f] %v1839
    $region49: #{ctc_loss.2} parent=1 // pred_fallthru
      _
    // Predicated region
    $region50: #{ctc_loss.2} parent=1 // pred_check
      _
    $region51: #{ctc_loss.2} parent=1 // pred_check_branch
      %1846 = sbr.rel (0) target = $region53
    $region52: #{ctc_loss.2} parent=1 // pred_region
      %s1847 = sadd.s32 0, 0
      %s1848 = smul.u32 8, %s1847
      %s1850 = ssub.s32 1024, 1024
      %1851 = vsyncadd [#allocation7], %s1850
      %s1852 = smul.addr %s1848, 128
      %s1853 = scalar_lea.hbm %s5, %s1852
      %s1854 = sshll.u32 [#allocation14], 4
      %s1855 = int_to_ptr.vmem [resolvable:$true] %s1854
      %1860 = dma.vmem_to_hbm [thread:$0]  %s1855, 1024, %s1853, [#allocation7], 128, 128, 8
    $region53: #{ctc_loss.2} parent=1 // pred_fallthru
      _
    // Predicated region
    $region54: #{ctc_loss.2} parent=1 // pred_check
      _
    $region55: #{ctc_loss.2} parent=1 // pred_check_branch
      %1862 = sbr.rel (0) target = $region57
    $region56: #{ctc_loss.2} parent=1 // pred_region
      %1863 = dma.done [#allocation7], 1024
    $region57: #{ctc_loss.2} parent=1 // pred_fallthru
      _
    %1864 = vsyncpa [#allocation6], 1
    %1865 = vsyncpa [#allocation9], 1
    %1866 = vsyncpa [#allocation12], 1
    %1867 = vsyncpa [#allocation7], 1

</llo_original>
